<compile_context>
chip_gen: v6e
topology: v6e:2x2x1
jax: 0.10.0
libtpu: 0.0.40
codegen_flags: <defaults>
</compile_context>

<pallas_src>
import functools

import jax
import jax.numpy as jnp
from jax.experimental import pallas as pl
from jax.experimental.pallas import tpu as pltpu

# ---- model hyper-parameters (small, consistent with the module) ----
DIM = 32          # embedding dim C
NUM_HEADS = 4
HEAD_DIM = DIM // NUM_HEADS
MLP_RATIO = 4.0
MLP_HIDDEN = int(DIM * MLP_RATIO)
LN_EPS = 1e-5     # torch.nn.LayerNorm default

# ---- tolerance-gated performance knobs (see review notes above) ----
GELU_APPROX = True    # tanh GELU (EUP); False = exact erf == torch.nn.GELU() default
MXU_BF16 = False      # cast GEMM operands to bf16 (f32 accumulate) for v6e/v7x MXUs

VMEM_LIMIT_BYTES = 48 * 1024 * 1024   # raise scoped VMEM limit (defaults 16/32 MiB)
VMEM_INTERMEDIATE_BUDGET = 24 * 1024 * 1024  # per-grid-step f32 intermediate budget


def _layernorm(x, gamma, beta):
    # x: (rows, C), gamma/beta: (1, C).  Biased variance, matching torch.nn.LayerNorm.
    mean = jnp.mean(x, axis=-1, keepdims=True)
    var = jnp.mean((x - mean) ** 2, axis=-1, keepdims=True)
    return (x - mean) * jax.lax.rsqrt(var + LN_EPS) * gamma + beta


def _cast_operand(x):
    # Optional bf16 MXU operands (v6e/v7x native); accumulation stays f32.
    return x.astype(jnp.bfloat16) if MXU_BF16 else x


def _mm(a, b):
    return jnp.dot(_cast_operand(a), _cast_operand(b),
                   preferred_element_type=jnp.float32)


def block_kernel(x_ref,
                 ln1_g_ref, ln1_b_ref,
                 qkv_w_ref,
                 proj_w_ref, proj_b_ref,
                 ln2_g_ref, ln2_b_ref,
                 fc1_w_ref, fc1_b_ref,
                 fc2_w_ref, fc2_b_ref,
                 o_ref,
                 attn_sc_ref,
                 *, tb, n, c, h):
    d = c // h
    rows = tb * n

    # ---- hoist every parameter read (and its broadcast) to a single load ----
    ln1_g = ln1_g_ref[...]
    ln1_b = ln1_b_ref[...]
    qkv_w = qkv_w_ref[...]          # Q columns pre-scaled by head_dim**-0.5 (host-side)
    proj_w = proj_w_ref[...]
    proj_b = proj_b_ref[...]
    ln2_g = ln2_g_ref[...]
    ln2_b = ln2_b_ref[...]
    fc1_w = fc1_w_ref[...]
    fc1_b = fc1_b_ref[...]
    fc2_w = fc2_w_ref[...]
    fc2_b = fc2_b_ref[...]

    # Flatten the (TB, N, C) tile into a (TB*N, C) row slab: every linear layer runs
    # with M = TB*N rows (leading-dim collapse only -> layout-trivial reshape).
    x = x_ref[...].astype(jnp.float32).reshape(rows, c)

    # ---------------- attention branch ----------------
    xn = _layernorm(x, ln1_g, ln1_b)
    qkv = _mm(xn, qkv_w)                                     # (rows, 3C), qkv_bias=False

    def to_heads(t2d):
        # (rows, C) -> (H*TB, N, D): per-head 8-lane static slices stacked along the
        # LEADING/batch dim (leading split + leading concat only; no minor-dim
        # merge/split relayouts).  Batch index = head * tb + sample.
        t3 = t2d.reshape(tb, n, c)
        return jnp.concatenate([t3[:, :, i * d:(i + 1) * d] for i in range(h)], axis=0)

    q_h = to_heads(qkv[:, 0 * c:1 * c])   # scale already folded into the weight
    k_h = to_heads(qkv[:, 1 * c:2 * c])
    v_h = to_heads(qkv[:, 2 * c:3 * c])

    # Two batched dot_generals over (heads * batch-tile) instead of 2*H small ones.
    s = jnp.einsum('bqd,bkd->bqk', _cast_operand(q_h), _cast_operand(k_h),
                   preferred_element_type=jnp.float32)       # (H*TB, N, N)
    s = s - jnp.max(s, axis=-1, keepdims=True)               # stable softmax
    p = jnp.exp(s)
    p = p * pl.reciprocal(jnp.sum(p, axis=-1, keepdims=True), approx=True)   # EUP slot
    o_h = jnp.einsum('bqk,bkd->bqd', _cast_operand(p), _cast_operand(v_h),
                     preferred_element_type=jnp.float32)     # (H*TB, N, D)

    # Reassemble heads onto lanes through a VMEM scratch slab (rows, C): bounds live
    # ranges and avoids a minor-dim concatenate (per review).  Head i -> columns
    # [i*D, (i+1)*D), matching PyTorch's transpose(1, 2).reshape(B, N, C).
    for i in range(h):
        attn_sc_ref[:, i * d:(i + 1) * d] = o_h[i * tb:(i + 1) * tb].reshape(rows, d)
    attn = attn_sc_ref[...]

    x = x + _mm(attn, proj_w) + proj_b                       # residual 1

    # ---------------- MLP branch ----------------
    xn2 = _layernorm(x, ln2_g, ln2_b)
    h1 = _mm(xn2, fc1_w) + fc1_b
    h1 = jax.nn.gelu(h1, approximate=GELU_APPROX)
    x = x + _mm(h1, fc2_w) + fc2_b                           # residual 2

    # TODO(synk): a lane-dense (TB, N*C) output slab needs a minor-dim-merging reshape
    # whose Mosaic lowering isn't guaranteed; kept the safe (TB, N, C) block layout.
    o_ref[...] = x.reshape(tb, n, c).astype(o_ref.dtype)


def _choose_batch_tile(B, N, C, H, hidden, budget=VMEM_INTERMEDIATE_BUDGET):
    """Pick TB (batch samples per grid step).

    Policy (per performance review):
      * Whole batch in ONE grid step when its estimated f32 intermediate footprint
        fits the VMEM budget (single-TC v5e/v6e: extra steps are pure per-step
        overhead; MXU M dim is maximized).
      * Otherwise the largest divisor of B that fits, preferring an EVEN number of
        grid steps so v7x's two TensorCores get balanced work.
    """
    # Rough per-sample f32 live-intermediate footprint: x, xn, qkv(3C), batched
    # q/k/v copies (3C), attn scratch, proj/residuals, mlp hidden (2x), plus
    # softmax score/prob matrices.
    per_sample = 4 * (N * C * 14 + N * hidden * 2 + 2 * H * N * N)
    fits = lambda tb: tb * per_sample <= budget
    if fits(B):
        return B
    divs = [tb for tb in range(1, B + 1) if B % tb == 0 and fits(tb)]
    if not divs:
        return 1
    even = [tb for tb in divs if (B // tb) % 2 == 0]
    return max(even) if even else max(divs)


def transformer_block(x, params):
    """x: (B, N, C) float32.  params: dict of weights (see init_params)."""
    B, N, C = x.shape
    assert C == DIM and C % NUM_HEADS == 0

    TB = _choose_batch_tile(B, N, C, NUM_HEADS, MLP_HIDDEN)
    grid = (B // TB,)

    # Fold the attention scale into the Q columns of the QKV weight (host-side, free;
    # valid only while qk_norm=False).
    scale = jnp.float32(HEAD_DIM ** -0.5)
    qkv_w_scaled = params["qkv_w"].at[:, :C].multiply(scale)

    param_list = [
        params["ln1_g"], params["ln1_b"],
        qkv_w_scaled,
        params["proj_w"], params["proj_b"],
        params["ln2_g"], params["ln2_b"],
        params["fc1_w"], params["fc1_b"],
        params["fc2_w"], params["fc2_b"],
    ]

    def full_spec(arr):
        # Whole-array block, replicated across the batch grid (weights stay VMEM-resident).
        return pl.BlockSpec(arr.shape, lambda b: (0,) * arr.ndim)

    in_specs = [pl.BlockSpec((TB, N, C), lambda b: (b, 0, 0))] + [full_spec(p) for p in param_list]
    out_specs = pl.BlockSpec((TB, N, C), lambda b: (b, 0, 0))

    kernel = functools.partial(block_kernel, tb=TB, n=N, c=C, h=NUM_HEADS)

    return pl.pallas_call(
        kernel,
        out_shape=jax.ShapeDtypeStruct((B, N, C), x.dtype),
        grid_spec=pltpu.PrefetchScalarGridSpec(
            num_scalar_prefetch=0,
            grid=grid,
            in_specs=in_specs,
            out_specs=out_specs,
            scratch_shapes=[pltpu.VMEM((TB * N, C), jnp.float32)],   # head->lane slab
        ),
        compiler_params=pltpu.CompilerParams(
            dimension_semantics=("parallel",),
            vmem_limit_bytes=VMEM_LIMIT_BYTES),
    )(x, *param_list)


def block_reference(x, params):
    """Pure-JAX reference mirroring the PyTorch Block forward (for a sanity check)."""
    B, N, C = x.shape
    H, D = NUM_HEADS, HEAD_DIM

    def ln(t, g, b):
        m = jnp.mean(t, axis=-1, keepdims=True)
        v = jnp.mean((t - m) ** 2, axis=-1, keepdims=True)
        return (t - m) / jnp.sqrt(v + LN_EPS) * g + b

    xn = ln(x, params["ln1_g"], params["ln1_b"])
    qkv = xn @ params["qkv_w"]                                    # (B, N, 3C)
    qkv = qkv.reshape(B, N, 3, H, D).transpose(2, 0, 3, 1, 4)     # (3, B, H, N, D)
    q, k, v = qkv[0], qkv[1], qkv[2]
    s = (q * (D ** -0.5)) @ jnp.swapaxes(k, -1, -2)               # (B, H, N, N)
    p = jax.nn.softmax(s, axis=-1)
    o = jnp.swapaxes(p @ v, 1, 2).reshape(B, N, C)
    x = x + o @ params["proj_w"] + params["proj_b"]
    xn2 = ln(x, params["ln2_g"], params["ln2_b"])
    h1 = jax.nn.gelu(xn2 @ params["fc1_w"] + params["fc1_b"], approximate=GELU_APPROX)
    return x + h1 @ params["fc2_w"] + params["fc2_b"]


def init_params(key):
    """Deterministic synthetic init; shapes follow the PyTorch module's __init__."""
    ks = jax.random.split(key, 8)
    std = 0.02
    return {
        # norm1
        "ln1_g": jnp.ones((1, DIM), jnp.float32),
        "ln1_b": jnp.zeros((1, DIM), jnp.float32),
        # attention (qkv_bias=False -> no qkv bias)
        "qkv_w": std * jax.random.normal(ks[0], (DIM, 3 * DIM), jnp.float32),
        "proj_w": std * jax.random.normal(ks[1], (DIM, DIM), jnp.float32),
        "proj_b": 0.01 * jax.random.normal(ks[2], (1, DIM), jnp.float32),
        # norm2
        "ln2_g": jnp.ones((1, DIM), jnp.float32),
        "ln2_b": jnp.zeros((1, DIM), jnp.float32),
        # mlp
        "fc1_w": std * jax.random.normal(ks[3], (DIM, MLP_HIDDEN), jnp.float32),
        "fc1_b": 0.01 * jax.random.normal(ks[4], (1, MLP_HIDDEN), jnp.float32),
        "fc2_w": std * jax.random.normal(ks[5], (MLP_HIDDEN, DIM), jnp.float32),
        "fc2_b": 0.01 * jax.random.normal(ks[6], (1, DIM), jnp.float32),
    }


if __name__ == "__main__":
    key = jax.random.PRNGKey(0)
    k_x, k_p = jax.random.split(key)

    B, N, C = 2, 8, DIM
    x = jax.random.normal(k_x, (B, N, C), jnp.float32)
    params = init_params(k_p)

    out = transformer_block(x, params)
    out = jax.block_until_ready(out)
    assert out.shape == (B, N, C)
    assert bool(jnp.all(jnp.isfinite(out)))

    # Sanity check vs. pure-JAX reference (tolerance covers the approx EUP reciprocal
    # in softmax and TPU matmul accumulation-order differences).
    ref = jax.block_until_ready(block_reference(x, params))
    max_err = float(jnp.max(jnp.abs(out - ref)))
    assert max_err < 2e-3, f"kernel deviates from reference: max_err={max_err}"

    print("KERNEL_OK")
</pallas_src>

<mosaic_0001>
module attributes {stable_mosaic.version = 11 : i64} {
  func.func @block_kernel(%arg0: i32, %arg1: memref<2x8x32xf32, #tpu.memory_space<vmem>>, %arg2: memref<1x32xf32, #tpu.memory_space<vmem>>, %arg3: memref<1x32xf32, #tpu.memory_space<vmem>>, %arg4: memref<32x96xf32, #tpu.memory_space<vmem>>, %arg5: memref<32x32xf32, #tpu.memory_space<vmem>>, %arg6: memref<1x32xf32, #tpu.memory_space<vmem>>, %arg7: memref<1x32xf32, #tpu.memory_space<vmem>>, %arg8: memref<1x32xf32, #tpu.memory_space<vmem>>, %arg9: memref<32x128xf32, #tpu.memory_space<vmem>>, %arg10: memref<1x128xf32, #tpu.memory_space<vmem>>, %arg11: memref<128x32xf32, #tpu.memory_space<vmem>>, %arg12: memref<1x32xf32, #tpu.memory_space<vmem>>, %arg13: memref<2x8x32xf32, #tpu.memory_space<vmem>>, %arg14: memref<16x32xf32, #tpu.memory_space<vmem>>) attributes {dimension_semantics = [#tpu.dimension_semantics<parallel>], iteration_bounds = array<i64: 1>, scalar_prefetch = 0 : i64, scratch_operands = 1 : i64, tpu.core_type = #tpu.core_type<tc>, window_params = [{transform_indices = @transform_0, window_bounds = array<i64: 2, 8, 32>}, {pipeline_mode = #tpu.pipeline_mode<synchronous>, transform_indices = @transform_1, window_bounds = array<i64: 1, 32>}, {pipeline_mode = #tpu.pipeline_mode<synchronous>, transform_indices = @transform_2, window_bounds = array<i64: 1, 32>}, {pipeline_mode = #tpu.pipeline_mode<synchronous>, transform_indices = @transform_3, window_bounds = array<i64: 32, 96>}, {pipeline_mode = #tpu.pipeline_mode<synchronous>, transform_indices = @transform_4, window_bounds = array<i64: 32, 32>}, {pipeline_mode = #tpu.pipeline_mode<synchronous>, transform_indices = @transform_5, window_bounds = array<i64: 1, 32>}, {pipeline_mode = #tpu.pipeline_mode<synchronous>, transform_indices = @transform_6, window_bounds = array<i64: 1, 32>}, {pipeline_mode = #tpu.pipeline_mode<synchronous>, transform_indices = @transform_7, window_bounds = array<i64: 1, 32>}, {pipeline_mode = #tpu.pipeline_mode<synchronous>, transform_indices = @transform_8, window_bounds = array<i64: 32, 128>}, {pipeline_mode = #tpu.pipeline_mode<synchronous>, transform_indices = @transform_9, window_bounds = array<i64: 1, 128>}, {pipeline_mode = #tpu.pipeline_mode<synchronous>, transform_indices = @transform_10, window_bounds = array<i64: 128, 32>}, {pipeline_mode = #tpu.pipeline_mode<synchronous>, transform_indices = @transform_11, window_bounds = array<i64: 1, 32>}, {transform_indices = @transform_12, window_bounds = array<i64: 2, 8, 32>}]} {
    %c0 = arith.constant 0 : index
    %c0_0 = arith.constant 0 : index
    %0 = vector.load %arg2[%c0, %c0_0] : memref<1x32xf32, #tpu.memory_space<vmem>>, vector<1x32xf32>
    %c0_1 = arith.constant 0 : index
    %c0_2 = arith.constant 0 : index
    %1 = vector.load %arg3[%c0_1, %c0_2] : memref<1x32xf32, #tpu.memory_space<vmem>>, vector<1x32xf32>
    %c0_3 = arith.constant 0 : index
    %c0_4 = arith.constant 0 : index
    %2 = vector.load %arg4[%c0_3, %c0_4] : memref<32x96xf32, #tpu.memory_space<vmem>>, vector<32x96xf32>
    %c0_5 = arith.constant 0 : index
    %c0_6 = arith.constant 0 : index
    %3 = vector.load %arg5[%c0_5, %c0_6] : memref<32x32xf32, #tpu.memory_space<vmem>>, vector<32x32xf32>
    %c0_7 = arith.constant 0 : index
    %c0_8 = arith.constant 0 : index
    %4 = vector.load %arg6[%c0_7, %c0_8] : memref<1x32xf32, #tpu.memory_space<vmem>>, vector<1x32xf32>
    %c0_9 = arith.constant 0 : index
    %c0_10 = arith.constant 0 : index
    %5 = vector.load %arg7[%c0_9, %c0_10] : memref<1x32xf32, #tpu.memory_space<vmem>>, vector<1x32xf32>
    %c0_11 = arith.constant 0 : index
    %c0_12 = arith.constant 0 : index
    %6 = vector.load %arg8[%c0_11, %c0_12] : memref<1x32xf32, #tpu.memory_space<vmem>>, vector<1x32xf32>
    %c0_13 = arith.constant 0 : index
    %c0_14 = arith.constant 0 : index
    %7 = vector.load %arg9[%c0_13, %c0_14] : memref<32x128xf32, #tpu.memory_space<vmem>>, vector<32x128xf32>
    %c0_15 = arith.constant 0 : index
    %c0_16 = arith.constant 0 : index
    %8 = vector.load %arg10[%c0_15, %c0_16] : memref<1x128xf32, #tpu.memory_space<vmem>>, vector<1x128xf32>
    %c0_17 = arith.constant 0 : index
    %c0_18 = arith.constant 0 : index
    %9 = vector.load %arg11[%c0_17, %c0_18] : memref<128x32xf32, #tpu.memory_space<vmem>>, vector<128x32xf32>
    %c0_19 = arith.constant 0 : index
    %c0_20 = arith.constant 0 : index
    %10 = vector.load %arg12[%c0_19, %c0_20] : memref<1x32xf32, #tpu.memory_space<vmem>>, vector<1x32xf32>
    %c0_21 = arith.constant 0 : index
    %c0_22 = arith.constant 0 : index
    %c0_23 = arith.constant 0 : index
    %11 = vector.load %arg1[%c0_21, %c0_22, %c0_23] : memref<2x8x32xf32, #tpu.memory_space<vmem>>, vector<2x8x32xf32>
    %12 = vector.shape_cast %11 : vector<2x8x32xf32> to vector<16x32xf32>
    %cst = arith.constant dense<0.000000e+00> : vector<16xf32>
    %13 = vector.multi_reduction <add>, %12, %cst [1] : vector<16x32xf32> to vector<16xf32>
    %14 = vector.shape_cast %13 : vector<16xf32> to vector<16x1xf32>
    %cst_24 = arith.constant 3.200000e+01 : f32
    %15 = vector.broadcast %cst_24 : f32 to vector<16x1xf32>
    %16 = arith.divf %14, %15 : vector<16x1xf32>
    %17 = vector.broadcast %16 : vector<16x1xf32> to vector<16x32xf32>
    %18 = arith.subf %12, %17 : vector<16x32xf32>
    %19 = arith.mulf %18, %18 : vector<16x32xf32>
    %cst_25 = arith.constant dense<0.000000e+00> : vector<16xf32>
    %20 = vector.multi_reduction <add>, %19, %cst_25 [1] : vector<16x32xf32> to vector<16xf32>
    %21 = vector.shape_cast %20 : vector<16xf32> to vector<16x1xf32>
    %cst_26 = arith.constant 3.200000e+01 : f32
    %22 = vector.broadcast %cst_26 : f32 to vector<16x1xf32>
    %23 = arith.divf %21, %22 : vector<16x1xf32>
    %24 = vector.broadcast %16 : vector<16x1xf32> to vector<16x32xf32>
    %25 = arith.subf %12, %24 : vector<16x32xf32>
    %cst_27 = arith.constant 9.99999974E-6 : f32
    %26 = vector.broadcast %cst_27 : f32 to vector<16x1xf32>
    %27 = arith.addf %23, %26 : vector<16x1xf32>
    %28 = math.rsqrt %27 : vector<16x1xf32>
    %29 = vector.broadcast %28 : vector<16x1xf32> to vector<16x32xf32>
    %30 = arith.mulf %25, %29 : vector<16x32xf32>
    %31 = vector.broadcast %0 : vector<1x32xf32> to vector<16x32xf32>
    %32 = arith.mulf %30, %31 : vector<16x32xf32>
    %33 = vector.broadcast %1 : vector<1x32xf32> to vector<16x32xf32>
    %34 = arith.addf %32, %33 : vector<16x32xf32>
    %cst_28 = arith.constant dense<0.000000e+00> : vector<16x96xf32>
    %35 = tpu.matmul %34, %2, %cst_28 {dimension_numbers = #tpu.dot_dimension_numbers<[1], [0], [0], [1], [0, 0, 1, 1], [], []>} : vector<16x32xf32>, vector<32x96xf32>, vector<16x96xf32> -> vector<16x96xf32>
    %36 = vector.extract_strided_slice %35 {offsets = [0, 0], sizes = [16, 32], strides = [1, 1]} : vector<16x96xf32> to vector<16x32xf32>
    %37 = vector.shape_cast %36 : vector<16x32xf32> to vector<2x8x32xf32>
    %38 = vector.extract_strided_slice %37 {offsets = [0, 0, 0], sizes = [2, 8, 8], strides = [1, 1, 1]} : vector<2x8x32xf32> to vector<2x8x8xf32>
    %39 = vector.extract_strided_slice %37 {offsets = [0, 0, 8], sizes = [2, 8, 8], strides = [1, 1, 1]} : vector<2x8x32xf32> to vector<2x8x8xf32>
    %40 = vector.extract_strided_slice %37 {offsets = [0, 0, 16], sizes = [2, 8, 8], strides = [1, 1, 1]} : vector<2x8x32xf32> to vector<2x8x8xf32>
    %41 = vector.extract_strided_slice %37 {offsets = [0, 0, 24], sizes = [2, 8, 8], strides = [1, 1, 1]} : vector<2x8x32xf32> to vector<2x8x8xf32>
    %42 = tpu.concatenate %38, %39, %40, %41 in 0 : vector<2x8x8xf32>, vector<2x8x8xf32>, vector<2x8x8xf32>, vector<2x8x8xf32> -> vector<8x8x8xf32>
    %43 = vector.extract_strided_slice %35 {offsets = [0, 32], sizes = [16, 32], strides = [1, 1]} : vector<16x96xf32> to vector<16x32xf32>
    %44 = vector.shape_cast %43 : vector<16x32xf32> to vector<2x8x32xf32>
    %45 = vector.extract_strided_slice %44 {offsets = [0, 0, 0], sizes = [2, 8, 8], strides = [1, 1, 1]} : vector<2x8x32xf32> to vector<2x8x8xf32>
    %46 = vector.extract_strided_slice %44 {offsets = [0, 0, 8], sizes = [2, 8, 8], strides = [1, 1, 1]} : vector<2x8x32xf32> to vector<2x8x8xf32>
    %47 = vector.extract_strided_slice %44 {offsets = [0, 0, 16], sizes = [2, 8, 8], strides = [1, 1, 1]} : vector<2x8x32xf32> to vector<2x8x8xf32>
    %48 = vector.extract_strided_slice %44 {offsets = [0, 0, 24], sizes = [2, 8, 8], strides = [1, 1, 1]} : vector<2x8x32xf32> to vector<2x8x8xf32>
    %49 = tpu.concatenate %45, %46, %47, %48 in 0 : vector<2x8x8xf32>, vector<2x8x8xf32>, vector<2x8x8xf32>, vector<2x8x8xf32> -> vector<8x8x8xf32>
    %50 = vector.extract_strided_slice %35 {offsets = [0, 64], sizes = [16, 32], strides = [1, 1]} : vector<16x96xf32> to vector<16x32xf32>
    %51 = vector.shape_cast %50 : vector<16x32xf32> to vector<2x8x32xf32>
    %52 = vector.extract_strided_slice %51 {offsets = [0, 0, 0], sizes = [2, 8, 8], strides = [1, 1, 1]} : vector<2x8x32xf32> to vector<2x8x8xf32>
    %53 = vector.extract_strided_slice %51 {offsets = [0, 0, 8], sizes = [2, 8, 8], strides = [1, 1, 1]} : vector<2x8x32xf32> to vector<2x8x8xf32>
    %54 = vector.extract_strided_slice %51 {offsets = [0, 0, 16], sizes = [2, 8, 8], strides = [1, 1, 1]} : vector<2x8x32xf32> to vector<2x8x8xf32>
    %55 = vector.extract_strided_slice %51 {offsets = [0, 0, 24], sizes = [2, 8, 8], strides = [1, 1, 1]} : vector<2x8x32xf32> to vector<2x8x8xf32>
    %56 = tpu.concatenate %52, %53, %54, %55 in 0 : vector<2x8x8xf32>, vector<2x8x8xf32>, vector<2x8x8xf32>, vector<2x8x8xf32> -> vector<8x8x8xf32>
    "tpu.trace_start"() <{level = 10 : i32, message = "bqd,bkd->bqk"}> : () -> ()
    %cst_29 = arith.constant dense<0.000000e+00> : vector<8x8x8xf32>
    %57 = tpu.matmul %42, %49, %cst_29 {dimension_numbers = #tpu.dot_dimension_numbers<[2], [2], [1], [1], [0, 0, 0, 1, 1, 1], [0], [0]>} : vector<8x8x8xf32>, vector<8x8x8xf32>, vector<8x8x8xf32> -> vector<8x8x8xf32>
    "tpu.trace_stop"() : () -> ()
    %cst_30 = arith.constant dense<0xFF800000> : vector<8x8xf32>
    %58 = vector.multi_reduction <maximumf>, %57, %cst_30 [2] : vector<8x8x8xf32> to vector<8x8xf32>
    %59 = vector.shape_cast %58 : vector<8x8xf32> to vector<8x8x1xf32>
    %60 = vector.broadcast %59 : vector<8x8x1xf32> to vector<8x8x8xf32>
    %61 = arith.subf %57, %60 : vector<8x8x8xf32>
    %62 = math.exp %61 : vector<8x8x8xf32>
    %cst_31 = arith.constant dense<0.000000e+00> : vector<8x8xf32>
    %63 = vector.multi_reduction <add>, %62, %cst_31 [2] : vector<8x8x8xf32> to vector<8x8xf32>
    %64 = vector.shape_cast %63 : vector<8x8xf32> to vector<8x8x1xf32>
    %65 = tpu.reciprocal %64 {approx = true} : vector<8x8x1xf32> -> vector<8x8x1xf32>
    %66 = vector.broadcast %65 : vector<8x8x1xf32> to vector<8x8x8xf32>
    %67 = arith.mulf %62, %66 : vector<8x8x8xf32>
    "tpu.trace_start"() <{level = 10 : i32, message = "bqk,bkd->bqd"}> : () -> ()
    %cst_32 = arith.constant dense<0.000000e+00> : vector<8x8x8xf32>
    %68 = tpu.matmul %67, %56, %cst_32 {dimension_numbers = #tpu.dot_dimension_numbers<[2], [1], [1], [2], [0, 0, 0, 1, 1, 2], [0], [0]>} : vector<8x8x8xf32>, vector<8x8x8xf32>, vector<8x8x8xf32> -> vector<8x8x8xf32>
    "tpu.trace_stop"() : () -> ()
    %69 = vector.extract_strided_slice %68 {offsets = [0, 0, 0], sizes = [2, 8, 8], strides = [1, 1, 1]} : vector<8x8x8xf32> to vector<2x8x8xf32>
    %70 = vector.shape_cast %69 : vector<2x8x8xf32> to vector<16x8xf32>
    %c0_33 = arith.constant 0 : index
    %c0_34 = arith.constant 0 : index
    %71 = vector.load %arg14[%c0_33, %c0_34] : memref<16x32xf32, #tpu.memory_space<vmem>>, vector<16x8xf32>
    tpu.vector_store %arg14[%c0_33, %c0_34], %70 {strides = array<i32>} : memref<16x32xf32, #tpu.memory_space<vmem>>, vector<16x8xf32>,
    %72 = vector.extract_strided_slice %68 {offsets = [2, 0, 0], sizes = [2, 8, 8], strides = [1, 1, 1]} : vector<8x8x8xf32> to vector<2x8x8xf32>
    %73 = vector.shape_cast %72 : vector<2x8x8xf32> to vector<16x8xf32>
    %c0_35 = arith.constant 0 : index
    %c8 = arith.constant 8 : index
    %74 = vector.load %arg14[%c0_35, %c8] : memref<16x32xf32, #tpu.memory_space<vmem>>, vector<16x8xf32>
    tpu.vector_store %arg14[%c0_35, %c8], %73 {strides = array<i32>} : memref<16x32xf32, #tpu.memory_space<vmem>>, vector<16x8xf32>,
    %75 = vector.extract_strided_slice %68 {offsets = [4, 0, 0], sizes = [2, 8, 8], strides = [1, 1, 1]} : vector<8x8x8xf32> to vector<2x8x8xf32>
    %76 = vector.shape_cast %75 : vector<2x8x8xf32> to vector<16x8xf32>
    %c0_36 = arith.constant 0 : index
    %c16 = arith.constant 16 : index
    %77 = vector.load %arg14[%c0_36, %c16] : memref<16x32xf32, #tpu.memory_space<vmem>>, vector<16x8xf32>
    tpu.vector_store %arg14[%c0_36, %c16], %76 {strides = array<i32>} : memref<16x32xf32, #tpu.memory_space<vmem>>, vector<16x8xf32>,
    %78 = vector.extract_strided_slice %68 {offsets = [6, 0, 0], sizes = [2, 8, 8], strides = [1, 1, 1]} : vector<8x8x8xf32> to vector<2x8x8xf32>
    %79 = vector.shape_cast %78 : vector<2x8x8xf32> to vector<16x8xf32>
    %c0_37 = arith.constant 0 : index
    %c24 = arith.constant 24 : index
    %80 = vector.load %arg14[%c0_37, %c24] : memref<16x32xf32, #tpu.memory_space<vmem>>, vector<16x8xf32>
    tpu.vector_store %arg14[%c0_37, %c24], %79 {strides = array<i32>} : memref<16x32xf32, #tpu.memory_space<vmem>>, vector<16x8xf32>,
    %c0_38 = arith.constant 0 : index
    %c0_39 = arith.constant 0 : index
    %81 = vector.load %arg14[%c0_38, %c0_39] : memref<16x32xf32, #tpu.memory_space<vmem>>, vector<16x32xf32>
    %cst_40 = arith.constant dense<0.000000e+00> : vector<16x32xf32>
    %82 = tpu.matmul %81, %3, %cst_40 {dimension_numbers = #tpu.dot_dimension_numbers<[1], [0], [0], [1], [0, 0, 1, 1], [], []>} : vector<16x32xf32>, vector<32x32xf32>, vector<16x32xf32> -> vector<16x32xf32>
    %83 = arith.addf %12, %82 : vector<16x32xf32>
    %84 = vector.broadcast %4 : vector<1x32xf32> to vector<16x32xf32>
    %85 = arith.addf %83, %84 : vector<16x32xf32>
    %cst_41 = arith.constant dense<0.000000e+00> : vector<16xf32>
    %86 = vector.multi_reduction <add>, %85, %cst_41 [1] : vector<16x32xf32> to vector<16xf32>
    %87 = vector.shape_cast %86 : vector<16xf32> to vector<16x1xf32>
    %cst_42 = arith.constant 3.200000e+01 : f32
    %88 = vector.broadcast %cst_42 : f32 to vector<16x1xf32>
    %89 = arith.divf %87, %88 : vector<16x1xf32>
    %90 = vector.broadcast %89 : vector<16x1xf32> to vector<16x32xf32>
    %91 = arith.subf %85, %90 : vector<16x32xf32>
    %92 = arith.mulf %91, %91 : vector<16x32xf32>
    %cst_43 = arith.constant dense<0.000000e+00> : vector<16xf32>
    %93 = vector.multi_reduction <add>, %92, %cst_43 [1] : vector<16x32xf32> to vector<16xf32>
    %94 = vector.shape_cast %93 : vector<16xf32> to vector<16x1xf32>
    %cst_44 = arith.constant 3.200000e+01 : f32
    %95 = vector.broadcast %cst_44 : f32 to vector<16x1xf32>
    %96 = arith.divf %94, %95 : vector<16x1xf32>
    %97 = vector.broadcast %89 : vector<16x1xf32> to vector<16x32xf32>
    %98 = arith.subf %85, %97 : vector<16x32xf32>
    %cst_45 = arith.constant 9.99999974E-6 : f32
    %99 = vector.broadcast %cst_45 : f32 to vector<16x1xf32>
    %100 = arith.addf %96, %99 : vector<16x1xf32>
    %101 = math.rsqrt %100 : vector<16x1xf32>
    %102 = vector.broadcast %101 : vector<16x1xf32> to vector<16x32xf32>
    %103 = arith.mulf %98, %102 : vector<16x32xf32>
    %104 = vector.broadcast %5 : vector<1x32xf32> to vector<16x32xf32>
    %105 = arith.mulf %103, %104 : vector<16x32xf32>
    %106 = vector.broadcast %6 : vector<1x32xf32> to vector<16x32xf32>
    %107 = arith.addf %105, %106 : vector<16x32xf32>
    %cst_46 = arith.constant dense<0.000000e+00> : vector<16x128xf32>
    %108 = tpu.matmul %107, %7, %cst_46 {dimension_numbers = #tpu.dot_dimension_numbers<[1], [0], [0], [1], [0, 0, 1, 1], [], []>} : vector<16x32xf32>, vector<32x128xf32>, vector<16x128xf32> -> vector<16x128xf32>
    %109 = vector.broadcast %8 : vector<1x128xf32> to vector<16x128xf32>
    %110 = arith.addf %108, %109 : vector<16x128xf32>
    %111 = arith.mulf %110, %110 : vector<16x128xf32>
    %112 = arith.mulf %110, %111 : vector<16x128xf32>
    %cst_47 = arith.constant 4.471500e-02 : f32
    %113 = vector.broadcast %cst_47 : f32 to vector<16x128xf32>
    %114 = arith.mulf %113, %112 : vector<16x128xf32>
    %115 = arith.addf %110, %114 : vector<16x128xf32>
    %cst_48 = arith.constant 0.797884583 : f32
    %116 = vector.broadcast %cst_48 : f32 to vector<16x128xf32>
    %117 = arith.mulf %116, %115 : vector<16x128xf32>
    %118 = math.tanh %117 : vector<16x128xf32>
    %cst_49 = arith.constant 1.000000e+00 : f32
    %119 = vector.broadcast %cst_49 : f32 to vector<16x128xf32>
    %120 = arith.addf %119, %118 : vector<16x128xf32>
    %cst_50 = arith.constant 5.000000e-01 : f32
    %121 = vector.broadcast %cst_50 : f32 to vector<16x128xf32>
    %122 = arith.mulf %121, %120 : vector<16x128xf32>
    %123 = arith.mulf %110, %122 : vector<16x128xf32>
    %cst_51 = arith.constant dense<0.000000e+00> : vector<16x32xf32>
    %124 = tpu.matmul %123, %9, %cst_51 {dimension_numbers = #tpu.dot_dimension_numbers<[1], [0], [0], [1], [0, 0, 1, 1], [], []>} : vector<16x128xf32>, vector<128x32xf32>, vector<16x32xf32> -> vector<16x32xf32>
    %125 = arith.addf %85, %124 : vector<16x32xf32>
    %126 = vector.broadcast %10 : vector<1x32xf32> to vector<16x32xf32>
    %127 = arith.addf %125, %126 : vector<16x32xf32>
    %128 = vector.shape_cast %127 : vector<16x32xf32> to vector<2x8x32xf32>
    %c0_52 = arith.constant 0 : index
    %c0_53 = arith.constant 0 : index
    %c0_54 = arith.constant 0 : index
    %129 = vector.load %arg13[%c0_52, %c0_53, %c0_54] : memref<2x8x32xf32, #tpu.memory_space<vmem>>, vector<2x8x32xf32>
    tpu.vector_store %arg13[%c0_52, %c0_53, %c0_54], %128 {strides = array<i32>} : memref<2x8x32xf32, #tpu.memory_space<vmem>>, vector<2x8x32xf32>,
    return
  }
  func.func @transform_0(%arg0: i32) -> (i32, i32, i32) {
    %c0_i32 = arith.constant 0 : i32
    %c0_i32_0 = arith.constant 0 : i32
    %c0_i32_1 = arith.constant 0 : i32
    return %arg0, %c0_i32, %c0_i32_0 : i32, i32, i32
  }
  func.func @transform_1(%arg0: i32) -> (i32, i32) {
    %c0_i32 = arith.constant 0 : i32
    %c0_i32_0 = arith.constant 0 : i32
    %c0_i32_1 = arith.constant 0 : i32
    return %c0_i32, %c0_i32_0 : i32, i32
  }
  func.func @transform_2(%arg0: i32) -> (i32, i32) {
    %c0_i32 = arith.constant 0 : i32
    %c0_i32_0 = arith.constant 0 : i32
    %c0_i32_1 = arith.constant 0 : i32
    return %c0_i32, %c0_i32_0 : i32, i32
  }
  func.func @transform_3(%arg0: i32) -> (i32, i32) {
    %c0_i32 = arith.constant 0 : i32
    %c0_i32_0 = arith.constant 0 : i32
    %c0_i32_1 = arith.constant 0 : i32
    return %c0_i32, %c0_i32_0 : i32, i32
  }
  func.func @transform_4(%arg0: i32) -> (i32, i32) {
    %c0_i32 = arith.constant 0 : i32
    %c0_i32_0 = arith.constant 0 : i32
    %c0_i32_1 = arith.constant 0 : i32
    return %c0_i32, %c0_i32_0 : i32, i32
  }
  func.func @transform_5(%arg0: i32) -> (i32, i32) {
    %c0_i32 = arith.constant 0 : i32
    %c0_i32_0 = arith.constant 0 : i32
    %c0_i32_1 = arith.constant 0 : i32
    return %c0_i32, %c0_i32_0 : i32, i32
  }
  func.func @transform_6(%arg0: i32) -> (i32, i32) {
    %c0_i32 = arith.constant 0 : i32
    %c0_i32_0 = arith.constant 0 : i32
    %c0_i32_1 = arith.constant 0 : i32
    return %c0_i32, %c0_i32_0 : i32, i32
  }
  func.func @transform_7(%arg0: i32) -> (i32, i32) {
    %c0_i32 = arith.constant 0 : i32
    %c0_i32_0 = arith.constant 0 : i32
    %c0_i32_1 = arith.constant 0 : i32
    return %c0_i32, %c0_i32_0 : i32, i32
  }
  func.func @transform_8(%arg0: i32) -> (i32, i32) {
    %c0_i32 = arith.constant 0 : i32
    %c0_i32_0 = arith.constant 0 : i32
    %c0_i32_1 = arith.constant 0 : i32
    return %c0_i32, %c0_i32_0 : i32, i32
  }
  func.func @transform_9(%arg0: i32) -> (i32, i32) {
    %c0_i32 = arith.constant 0 : i32
    %c0_i32_0 = arith.constant 0 : i32
    %c0_i32_1 = arith.constant 0 : i32
    return %c0_i32, %c0_i32_0 : i32, i32
  }
  func.func @transform_10(%arg0: i32) -> (i32, i32) {
    %c0_i32 = arith.constant 0 : i32
    %c0_i32_0 = arith.constant 0 : i32
    %c0_i32_1 = arith.constant 0 : i32
    return %c0_i32, %c0_i32_0 : i32, i32
  }
  func.func @transform_11(%arg0: i32) -> (i32, i32) {
    %c0_i32 = arith.constant 0 : i32
    %c0_i32_0 = arith.constant 0 : i32
    %c0_i32_1 = arith.constant 0 : i32
    return %c0_i32, %c0_i32_0 : i32, i32
  }
  func.func @transform_12(%arg0: i32) -> (i32, i32, i32) {
    %c0_i32 = arith.constant 0 : i32
    %c0_i32_0 = arith.constant 0 : i32
    %c0_i32_1 = arith.constant 0 : i32
    return %arg0, %c0_i32, %c0_i32_0 : i32, i32, i32
  }
}

</mosaic_0001>

<llo_original>
// kernel: tpu_custom_call.1
$region0: #{tpu_custom_call.1}
  #allocation0 [shape = 'u32[]', space=smem, size = 0x4, offset = 0x4, fixed_abs, tag = 'smem constant byte address 0x4 - core index']
  #allocation1 [shape = 'u32[144,128]{1,0:T(1,128)}', space=vmem, size = 0x12000, scoped, tag = 'internal scratch']
  #allocation2 [shape = 'f32[16,32]{1,0:T(8,128)}', space=vmem, size = 0x2000, scoped, tag = 'scratch operand']
  %s0 = inlined_call_operand.vmem [shape: f32[2,8,32], index: 0, kind: input, shape index: {}]
  %s1 = inlined_call_operand.vmem [shape: f32[1,32], index: 1, kind: input, shape index: {}]
  %s2 = inlined_call_operand.vmem [shape: f32[1,32], index: 2, kind: input, shape index: {}]
  %s3 = inlined_call_operand.vmem [shape: f32[32,96], index: 3, kind: input, shape index: {}]
  %s4 = inlined_call_operand.vmem [shape: f32[32,32], index: 4, kind: input, shape index: {}]
  %s5 = inlined_call_operand.vmem [shape: f32[1,32], index: 5, kind: input, shape index: {}]
  %s6 = inlined_call_operand.vmem [shape: f32[1,32], index: 6, kind: input, shape index: {}]
  %s7 = inlined_call_operand.vmem [shape: f32[1,32], index: 7, kind: input, shape index: {}]
  %s8 = inlined_call_operand.vmem [shape: f32[32,128], index: 8, kind: input, shape index: {}]
  %s9 = inlined_call_operand.vmem [shape: f32[1,128], index: 9, kind: input, shape index: {}]
  %s10 = inlined_call_operand.vmem [shape: f32[128,32], index: 10, kind: input, shape index: {}]
  %s11 = inlined_call_operand.vmem [shape: f32[1,32], index: 11, kind: input, shape index: {}]
  %s12 = inlined_call_operand.hbm [shape: f32[2,8,32], index: 12, kind: output, shape index: {}]
  %s13 = sld [smem:[#allocation0]]
  $region58: #{tpu_custom_call.1} parent=0
    _
  %s15 = ssub.s32 1, %s13
  %s16 = scalar_select 0, %s15, %s13
  $region1: #{tpu_custom_call.1} parent=0
    #allocation3 [shape = 'u8[8192]{0}', space=vmem, size = 0x2000, scoped, tag = 'output window, operand 0, single buffered']
    #allocation4 [shape = 's32[1]{0}', space=sflag, size = 0x4, scoped, tag = 'scoped memory for tpu_custom_call.1']
    %17 = vsyncpa [#allocation4], 0
    // Predicated region
    $region2: #{tpu_custom_call.1} parent=1 // pred_check
      _
    $region3: #{tpu_custom_call.1} parent=1 // pred_check_branch
      %19 = sbr.rel (0) target = $region5
    $region4: #{tpu_custom_call.1} parent=1 // pred_region
      _
    $region5: #{tpu_custom_call.1} parent=1 // pred_fallthru
      _
    // Predicated region
    $region6: #{tpu_custom_call.1} parent=1 // pred_check
      _
    $region7: #{tpu_custom_call.1} parent=1 // pred_check_branch
      %21 = sbr.rel (0) target = $region9
    $region8: #{tpu_custom_call.1} parent=1 // pred_region
      _
    $region9: #{tpu_custom_call.1} parent=1 // pred_fallthru
      _
    // Predicated region
    $region10: #{tpu_custom_call.1} parent=1 // pred_check
      _
    $region11: #{tpu_custom_call.1} parent=1 // pred_check_branch
      %23 = sbr.rel (0) target = $region13
    $region12: #{tpu_custom_call.1} parent=1 // pred_region
      _
    $region13: #{tpu_custom_call.1} parent=1 // pred_fallthru
      _
    // Predicated region
    $region14: #{tpu_custom_call.1} parent=1 // pred_check
      _
    $region15: #{tpu_custom_call.1} parent=1 // pred_check_branch
      %25 = sbr.rel (0) target = $region17
    $region16: #{tpu_custom_call.1} parent=1 // pred_region
      _
    $region17: #{tpu_custom_call.1} parent=1 // pred_fallthru
      _
    // Predicated region
    $region18: #{tpu_custom_call.1} parent=1 // pred_check
      _
    $region19: #{tpu_custom_call.1} parent=1 // pred_check_branch
      %27 = sbr.rel (0) target = $region21
    $region20: #{tpu_custom_call.1} parent=1 // pred_region
      _
    $region21: #{tpu_custom_call.1} parent=1 // pred_fallthru
      _
    // Predicated region
    $region22: #{tpu_custom_call.1} parent=1 // pred_check
      _
    $region23: #{tpu_custom_call.1} parent=1 // pred_check_branch
      %29 = sbr.rel (0) target = $region25
    $region24: #{tpu_custom_call.1} parent=1 // pred_region
      _
    $region25: #{tpu_custom_call.1} parent=1 // pred_fallthru
      _
    // Predicated region
    $region26: #{tpu_custom_call.1} parent=1 // pred_check
      _
    $region27: #{tpu_custom_call.1} parent=1 // pred_check_branch
      %31 = sbr.rel (0) target = $region29
    $region28: #{tpu_custom_call.1} parent=1 // pred_region
      _
    $region29: #{tpu_custom_call.1} parent=1 // pred_fallthru
      _
    // Predicated region
    $region30: #{tpu_custom_call.1} parent=1 // pred_check
      _
    $region31: #{tpu_custom_call.1} parent=1 // pred_check_branch
      %33 = sbr.rel (0) target = $region33
    $region32: #{tpu_custom_call.1} parent=1 // pred_region
      _
    $region33: #{tpu_custom_call.1} parent=1 // pred_fallthru
      _
    // Predicated region
    $region34: #{tpu_custom_call.1} parent=1 // pred_check
      _
    $region35: #{tpu_custom_call.1} parent=1 // pred_check_branch
      %35 = sbr.rel (0) target = $region37
    $region36: #{tpu_custom_call.1} parent=1 // pred_region
      _
    $region37: #{tpu_custom_call.1} parent=1 // pred_fallthru
      _
    // Predicated region
    $region38: #{tpu_custom_call.1} parent=1 // pred_check
      _
    $region39: #{tpu_custom_call.1} parent=1 // pred_check_branch
      %37 = sbr.rel (0) target = $region41
    $region40: #{tpu_custom_call.1} parent=1 // pred_region
      _
    $region41: #{tpu_custom_call.1} parent=1 // pred_fallthru
      _
    // Predicated region
    $region42: #{tpu_custom_call.1} parent=1 // pred_check
      _
    $region43: #{tpu_custom_call.1} parent=1 // pred_check_branch
      %39 = sbr.rel (0) target = $region45
    $region44: #{tpu_custom_call.1} parent=1 // pred_region
      _
    $region45: #{tpu_custom_call.1} parent=1 // pred_fallthru
      _
    // Predicated region
    $region46: #{tpu_custom_call.1} parent=1 // pred_check
      _
    $region47: #{tpu_custom_call.1} parent=1 // pred_check_branch
      %41 = sbr.rel (0) target = $region49
    $region48: #{tpu_custom_call.1} parent=1 // pred_region
      _
    $region49: #{tpu_custom_call.1} parent=1 // pred_fallthru
      _
    %v42 = vld [vmem:[%s1] sm:$0x1]
    %v43 = vld [vmem:[%s2] sm:$0x1]
    %v44 = vld [vmem:[%s3] sm:$0xff]
    %v45 = vld [vmem:[%s3 + $0x8] sm:$0xff]
    %v46 = vld [vmem:[%s3 + $0x10] sm:$0xff]
    %v47 = vld [vmem:[%s3 + $0x18] sm:$0xff]
    %v48 = vld [vmem:[%s4] sm:$0xff]
    %v49 = vld [vmem:[%s4 + $0x8] sm:$0xff]
    %v50 = vld [vmem:[%s4 + $0x10] sm:$0xff]
    %v51 = vld [vmem:[%s4 + $0x18] sm:$0xff]
    %v52 = vld [vmem:[%s5] sm:$0x1]
    %v53 = vld [vmem:[%s6] sm:$0x1]
    %v54 = vld [vmem:[%s7] sm:$0x1]
    %v55 = vld [vmem:[%s8] sm:$0xff]
    %v56 = vld [vmem:[%s8 + $0x8] sm:$0xff]
    %v57 = vld [vmem:[%s8 + $0x10] sm:$0xff]
    %v58 = vld [vmem:[%s8 + $0x18] sm:$0xff]
    %v59 = vld [vmem:[%s9] sm:$0x1]
    %v60 = vld [vmem:[%s10] sm:$0xff]
    %v61 = vld [vmem:[%s10 + $0x8] sm:$0xff]
    %v62 = vld [vmem:[%s10 + $0x10] sm:$0xff]
    %v63 = vld [vmem:[%s10 + $0x18] sm:$0xff]
    %v64 = vld [vmem:[%s10 + $0x20] sm:$0xff]
    %v65 = vld [vmem:[%s10 + $0x28] sm:$0xff]
    %v66 = vld [vmem:[%s10 + $0x30] sm:$0xff]
    %v67 = vld [vmem:[%s10 + $0x38] sm:$0xff]
    %v68 = vld [vmem:[%s10 + $0x40] sm:$0xff]
    %v69 = vld [vmem:[%s10 + $0x48] sm:$0xff]
    %v70 = vld [vmem:[%s10 + $0x50] sm:$0xff]
    %v71 = vld [vmem:[%s10 + $0x58] sm:$0xff]
    %v72 = vld [vmem:[%s10 + $0x60] sm:$0xff]
    %v73 = vld [vmem:[%s10 + $0x68] sm:$0xff]
    %v74 = vld [vmem:[%s10 + $0x70] sm:$0xff]
    %v75 = vld [vmem:[%s10 + $0x78] sm:$0xff]
    %v76 = vld [vmem:[%s11] sm:$0x1]
    %v77 = vld [vmem:[%s0] sm:$0xff]
    %v78 = vld [vmem:[%s0 + $0x8] sm:$0xff]
    %vm79 = vcmask 261120
    %v80 = vsel %vm79, %v77, 0.0
    %81 = vadd.xlane.f32.xlu0 %v80
    %v82 = vpop.xlane.xlu0 %81
    %v83 = vsel %vm79, %v78, 0.0
    %84 = vadd.xlane.f32.xlu0 %v83
    %v85 = vpop.xlane.xlu0 %84
    %v86 = vrcp.pop 32.0
    %v87 = vmul.f32 %v82, %v86
    %v88 = vmul.f32 %v85, %v86
    %v89 = vsub.f32 %v77, %v87
    %v90 = vsub.f32 %v78, %v88
    %v91 = vmul.f32 %v89, %v89
    %v92 = vmul.f32 %v90, %v90
    %v93 = vsel %vm79, %v91, 0.0
    %94 = vadd.xlane.f32.xlu0 %v93
    %v95 = vpop.xlane.xlu0 %94
    %v96 = vsel %vm79, %v92, 0.0
    %97 = vadd.xlane.f32.xlu0 %v96
    %v98 = vpop.xlane.xlu0 %97
    %v99 = vmul.f32 %v95, %v86
    %v100 = vmul.f32 %v98, %v86
    %v101 = vadd.f32 %v99, 1e-05
    %v102 = vadd.f32 %v100, 1e-05
    %v103 = vrsqrt.pop %v101
    %v104 = vrsqrt.pop %v102
    %v105 = vmul.f32 %v89, %v103
    %v106 = vmul.f32 %v90, %v104
    %v108 = vlaneseq
    %v109 = vshrl.u32 %v108, 7
    %v110 = vsub.s32 0, %v109
    %v111 = vrot.slane %v42, %v110
    %v113 = vmul.f32 %v105, %v111
    %v114 = vmul.f32 %v106, %v111
    %v116 = vlaneseq
    %v117 = vshrl.u32 %v116, 7
    %v118 = vsub.s32 0, %v117
    %v119 = vrot.slane %v43, %v118
    %v121 = vadd.f32 %v113, %v119
    %v122 = vadd.f32 %v114, %v119
    %v124 = vsel %vm79, %v121, 0
    %v127 = vsel %vm79, %v122, 0
    %129 = vmatprep.subr.mxu0 0.0
    %130 = vmatpush1.msra.mxu0 0.0
    %131 = vmatprep.subr.mxu0 0.0
    %132 = vmatpush1.msra.mxu0 0.0
    %133 = vmatprep.subr.mxu0 0.0
    %134 = vmatpush1.msra.mxu0 0.0
    %135 = vmatprep.subr.mxu0 0.0
    %136 = vmatpush1.msra.mxu0 0.0
    %137 = vmatprep.subr.mxu0 0.0
    %138 = vmatpush1.msra.mxu0 0.0
    %139 = vmatprep.subr.mxu0 0.0
    %140 = vmatpush1.msra.mxu0 0.0
    %141 = vmatprep.subr.mxu0 0.0
    %142 = vmatpush1.msra.mxu0 0.0
    %143 = vmatprep.subr.mxu0 0.0
    %144 = vmatpush1.msra.mxu0 0.0
    %145 = vmatprep.subr.mxu0 0.0
    %146 = vmatpush1.msra.mxu0 0.0
    %147 = vmatprep.subr.mxu0 0.0
    %148 = vmatpush1.msra.mxu0 0.0
    %149 = vmatprep.subr.mxu0 0.0
    %150 = vmatpush1.msra.mxu0 0.0
    %151 = vmatprep.subr.mxu0 0.0
    %152 = vmatpush1.msra.mxu0 0.0
    %153 = vmatprep.subr.mxu0 0.0
    %154 = vmatpush1.msra.mxu0 %v47
    %155 = vmatprep.subr.mxu0 0.0
    %156 = vmatpush1.msra.mxu0 %v46
    %157 = vmatprep.subr.mxu0 0.0
    %158 = vmatpush1.msra.mxu0 %v45
    %159 = vmatprep.subr.mxu0 0.0
    %160 = vmatpush1.msra.mxu0 %v44
    %161 = vmatprep.subr.mxu0 0.0
    %162 = vmatpush2.msra.mxu0 0.0
    %163 = vmatprep.subr.mxu0 0.0
    %164 = vmatpush2.msra.mxu0 0.0
    %165 = vmatprep.subr.mxu0 0.0
    %166 = vmatpush2.msra.mxu0 0.0
    %167 = vmatprep.subr.mxu0 0.0
    %168 = vmatpush2.msra.mxu0 0.0
    %169 = vmatprep.subr.mxu0 0.0
    %170 = vmatpush2.msra.mxu0 0.0
    %171 = vmatprep.subr.mxu0 0.0
    %172 = vmatpush2.msra.mxu0 0.0
    %173 = vmatprep.subr.mxu0 0.0
    %174 = vmatpush2.msra.mxu0 0.0
    %175 = vmatprep.subr.mxu0 0.0
    %176 = vmatpush2.msra.mxu0 0.0
    %177 = vmatprep.subr.mxu0 0.0
    %178 = vmatpush2.msra.mxu0 0.0
    %179 = vmatprep.subr.mxu0 0.0
    %180 = vmatpush2.msra.mxu0 0.0
    %181 = vmatprep.subr.mxu0 0.0
    %182 = vmatpush2.msra.mxu0 0.0
    %183 = vmatprep.subr.mxu0 0.0
    %184 = vmatpush2.msra.mxu0 0.0
    %185 = vmatprep.subr.mxu0 0.0
    %186 = vmatpush2.msra.mxu0 0.0
    %187 = vmatprep.subr.mxu0 0.0
    %188 = vmatpush2.msra.mxu0 0.0
    %189 = vmatprep.subr.mxu0 0.0
    %190 = vmatpush2.msra.mxu0 0.0
    %191 = vmatprep.subr.mxu0 0.0
    %192 = vmatpush2.msra.mxu0 0.0
    %193 = vmatprep.mubr.f32.mxu0 0.0
    %194 = vmatmul.mubr.f32.gmra.mxu0 %v124
    %v195 = vpop.f32.mrf.mxu0
    %v196 = vadd.f32 0.0, %v195
    %v197 = vpop.f32.mrf.mxu0
    %198 = vmatprep.mubr.f32.mxu0 0.0
    %199 = vmatmul.mubr.f32.gmra.mxu0 %v127
    %v200 = vpop.f32.mrf.mxu0
    %v201 = vadd.f32 0.0, %v200
    %v202 = vpop.f32.mrf.mxu0
    %203 = vdwg.mxu0
    %206 = vrot.lane.b32.xlu0 %v196, 120
    %v207 = vpop.permute.xlu0 %206
    %208 = vrot.lane.b32.xlu0 %v201, 120
    %v209 = vpop.permute.xlu0 %208
    %210 = vrot.lane.b32.xlu0 %v196, 112
    %v211 = vpop.permute.xlu0 %210
    %212 = vrot.lane.b32.xlu0 %v201, 112
    %v213 = vpop.permute.xlu0 %212
    %214 = vrot.lane.b32.xlu0 %v196, 104
    %v215 = vpop.permute.xlu0 %214
    %216 = vrot.lane.b32.xlu0 %v201, 104
    %v217 = vpop.permute.xlu0 %216
    %218 = vrot.lane.b32.xlu0 %v196, 96
    %v219 = vpop.permute.xlu0 %218
    %vm220 = vcmask 64512
    %v221 = vsel %vm220, %v196, 0
    %v223 = vsel %vm220, %v219, 0
    %225 = vmatprep.subr.mxu0 0.0
    %226 = vmatpush1.xpose.msra.mxu0 0.0
    %227 = vmatprep.subr.mxu0 0.0
    %228 = vmatpush1.xpose.msra.mxu0 0.0
    %229 = vmatprep.subr.mxu0 0.0
    %230 = vmatpush1.xpose.msra.mxu0 0.0
    %231 = vmatprep.subr.mxu0 0.0
    %232 = vmatpush1.xpose.msra.mxu0 0.0
    %233 = vmatprep.subr.mxu0 0.0
    %234 = vmatpush1.xpose.msra.mxu0 0.0
    %235 = vmatprep.subr.mxu0 0.0
    %236 = vmatpush1.xpose.msra.mxu0 0.0
    %237 = vmatprep.subr.mxu0 0.0
    %238 = vmatpush1.xpose.msra.mxu0 0.0
    %239 = vmatprep.subr.mxu0 0.0
    %240 = vmatpush1.xpose.msra.mxu0 0.0
    %241 = vmatprep.subr.mxu0 0.0
    %242 = vmatpush1.xpose.msra.mxu0 0.0
    %243 = vmatprep.subr.mxu0 0.0
    %244 = vmatpush1.xpose.msra.mxu0 0.0
    %245 = vmatprep.subr.mxu0 0.0
    %246 = vmatpush1.xpose.msra.mxu0 0.0
    %247 = vmatprep.subr.mxu0 0.0
    %248 = vmatpush1.xpose.msra.mxu0 0.0
    %249 = vmatprep.subr.mxu0 0.0
    %250 = vmatpush1.xpose.msra.mxu0 0.0
    %251 = vmatprep.subr.mxu0 0.0
    %252 = vmatpush1.xpose.msra.mxu0 0.0
    %253 = vmatprep.subr.mxu0 0.0
    %254 = vmatpush1.xpose.msra.mxu0 0.0
    %255 = vmatprep.subr.mxu0 0.0
    %256 = vmatpush1.xpose.msra.mxu0 %v223
    %257 = vmatprep.subr.mxu0 0.0
    %258 = vmatpush2.xpose.msra.mxu0 0.0
    %259 = vmatprep.subr.mxu0 0.0
    %260 = vmatpush2.xpose.msra.mxu0 0.0
    %261 = vmatprep.subr.mxu0 0.0
    %262 = vmatpush2.xpose.msra.mxu0 0.0
    %263 = vmatprep.subr.mxu0 0.0
    %264 = vmatpush2.xpose.msra.mxu0 0.0
    %265 = vmatprep.subr.mxu0 0.0
    %266 = vmatpush2.xpose.msra.mxu0 0.0
    %267 = vmatprep.subr.mxu0 0.0
    %268 = vmatpush2.xpose.msra.mxu0 0.0
    %269 = vmatprep.subr.mxu0 0.0
    %270 = vmatpush2.xpose.msra.mxu0 0.0
    %271 = vmatprep.subr.mxu0 0.0
    %272 = vmatpush2.xpose.msra.mxu0 0.0
    %273 = vmatprep.subr.mxu0 0.0
    %274 = vmatpush2.xpose.msra.mxu0 0.0
    %275 = vmatprep.subr.mxu0 0.0
    %276 = vmatpush2.xpose.msra.mxu0 0.0
    %277 = vmatprep.subr.mxu0 0.0
    %278 = vmatpush2.xpose.msra.mxu0 0.0
    %279 = vmatprep.subr.mxu0 0.0
    %280 = vmatpush2.xpose.msra.mxu0 0.0
    %281 = vmatprep.subr.mxu0 0.0
    %282 = vmatpush2.xpose.msra.mxu0 0.0
    %283 = vmatprep.subr.mxu0 0.0
    %284 = vmatpush2.xpose.msra.mxu0 0.0
    %285 = vmatprep.subr.mxu0 0.0
    %286 = vmatpush2.xpose.msra.mxu0 0.0
    %287 = vmatprep.subr.mxu0 0.0
    %288 = vmatpush2.xpose.msra.mxu0 0.0
    %289 = vmatprep.mubr.f32.mxu0 0.0
    %290 = vmatmul.mubr.f32.gmra.mxu0 %v221
    %v291 = vpop.f32.mrf.mxu0
    %v292 = vadd.f32 0.0, %v291
    %v293 = vpop.f32.mrf.mxu0
    %294 = vdwg.mxu0
    %295 = vrot.lane.b32.xlu0 %v201, 96
    %v296 = vpop.permute.xlu0 %295
    %v297 = vsel %vm220, %v201, 0
    %v299 = vsel %vm220, %v296, 0
    %301 = vmatprep.subr.mxu0 0.0
    %302 = vmatpush1.xpose.msra.mxu0 0.0
    %303 = vmatprep.subr.mxu0 0.0
    %304 = vmatpush1.xpose.msra.mxu0 0.0
    %305 = vmatprep.subr.mxu0 0.0
    %306 = vmatpush1.xpose.msra.mxu0 0.0
    %307 = vmatprep.subr.mxu0 0.0
    %308 = vmatpush1.xpose.msra.mxu0 0.0
    %309 = vmatprep.subr.mxu0 0.0
    %310 = vmatpush1.xpose.msra.mxu0 0.0
    %311 = vmatprep.subr.mxu0 0.0
    %312 = vmatpush1.xpose.msra.mxu0 0.0
    %313 = vmatprep.subr.mxu0 0.0
    %314 = vmatpush1.xpose.msra.mxu0 0.0
    %315 = vmatprep.subr.mxu0 0.0
    %316 = vmatpush1.xpose.msra.mxu0 0.0
    %317 = vmatprep.subr.mxu0 0.0
    %318 = vmatpush1.xpose.msra.mxu0 0.0
    %319 = vmatprep.subr.mxu0 0.0
    %320 = vmatpush1.xpose.msra.mxu0 0.0
    %321 = vmatprep.subr.mxu0 0.0
    %322 = vmatpush1.xpose.msra.mxu0 0.0
    %323 = vmatprep.subr.mxu0 0.0
    %324 = vmatpush1.xpose.msra.mxu0 0.0
    %325 = vmatprep.subr.mxu0 0.0
    %326 = vmatpush1.xpose.msra.mxu0 0.0
    %327 = vmatprep.subr.mxu0 0.0
    %328 = vmatpush1.xpose.msra.mxu0 0.0
    %329 = vmatprep.subr.mxu0 0.0
    %330 = vmatpush1.xpose.msra.mxu0 0.0
    %331 = vmatprep.subr.mxu0 0.0
    %332 = vmatpush1.xpose.msra.mxu0 %v299
    %333 = vmatprep.subr.mxu0 0.0
    %334 = vmatpush2.xpose.msra.mxu0 0.0
    %335 = vmatprep.subr.mxu0 0.0
    %336 = vmatpush2.xpose.msra.mxu0 0.0
    %337 = vmatprep.subr.mxu0 0.0
    %338 = vmatpush2.xpose.msra.mxu0 0.0
    %339 = vmatprep.subr.mxu0 0.0
    %340 = vmatpush2.xpose.msra.mxu0 0.0
    %341 = vmatprep.subr.mxu0 0.0
    %342 = vmatpush2.xpose.msra.mxu0 0.0
    %343 = vmatprep.subr.mxu0 0.0
    %344 = vmatpush2.xpose.msra.mxu0 0.0
    %345 = vmatprep.subr.mxu0 0.0
    %346 = vmatpush2.xpose.msra.mxu0 0.0
    %347 = vmatprep.subr.mxu0 0.0
    %348 = vmatpush2.xpose.msra.mxu0 0.0
    %349 = vmatprep.subr.mxu0 0.0
    %350 = vmatpush2.xpose.msra.mxu0 0.0
    %351 = vmatprep.subr.mxu0 0.0
    %352 = vmatpush2.xpose.msra.mxu0 0.0
    %353 = vmatprep.subr.mxu0 0.0
    %354 = vmatpush2.xpose.msra.mxu0 0.0
    %355 = vmatprep.subr.mxu0 0.0
    %356 = vmatpush2.xpose.msra.mxu0 0.0
    %357 = vmatprep.subr.mxu0 0.0
    %358 = vmatpush2.xpose.msra.mxu0 0.0
    %359 = vmatprep.subr.mxu0 0.0
    %360 = vmatpush2.xpose.msra.mxu0 0.0
    %361 = vmatprep.subr.mxu0 0.0
    %362 = vmatpush2.xpose.msra.mxu0 0.0
    %363 = vmatprep.subr.mxu0 0.0
    %364 = vmatpush2.xpose.msra.mxu0 0.0
    %365 = vmatprep.mubr.f32.mxu0 0.0
    %366 = vmatmul.mubr.f32.gmra.mxu0 %v297
    %v367 = vpop.f32.mrf.mxu0
    %v368 = vadd.f32 0.0, %v367
    %v369 = vpop.f32.mrf.mxu0
    %370 = vdwg.mxu0
    %371 = vrot.lane.b32.xlu0 %v207, 96
    %v372 = vpop.permute.xlu0 %371
    %v373 = vsel %vm220, %v207, 0
    %v375 = vsel %vm220, %v372, 0
    %377 = vmatprep.subr.mxu0 0.0
    %378 = vmatpush1.xpose.msra.mxu0 0.0
    %379 = vmatprep.subr.mxu0 0.0
    %380 = vmatpush1.xpose.msra.mxu0 0.0
    %381 = vmatprep.subr.mxu0 0.0
    %382 = vmatpush1.xpose.msra.mxu0 0.0
    %383 = vmatprep.subr.mxu0 0.0
    %384 = vmatpush1.xpose.msra.mxu0 0.0
    %385 = vmatprep.subr.mxu0 0.0
    %386 = vmatpush1.xpose.msra.mxu0 0.0
    %387 = vmatprep.subr.mxu0 0.0
    %388 = vmatpush1.xpose.msra.mxu0 0.0
    %389 = vmatprep.subr.mxu0 0.0
    %390 = vmatpush1.xpose.msra.mxu0 0.0
    %391 = vmatprep.subr.mxu0 0.0
    %392 = vmatpush1.xpose.msra.mxu0 0.0
    %393 = vmatprep.subr.mxu0 0.0
    %394 = vmatpush1.xpose.msra.mxu0 0.0
    %395 = vmatprep.subr.mxu0 0.0
    %396 = vmatpush1.xpose.msra.mxu0 0.0
    %397 = vmatprep.subr.mxu0 0.0
    %398 = vmatpush1.xpose.msra.mxu0 0.0
    %399 = vmatprep.subr.mxu0 0.0
    %400 = vmatpush1.xpose.msra.mxu0 0.0
    %401 = vmatprep.subr.mxu0 0.0
    %402 = vmatpush1.xpose.msra.mxu0 0.0
    %403 = vmatprep.subr.mxu0 0.0
    %404 = vmatpush1.xpose.msra.mxu0 0.0
    %405 = vmatprep.subr.mxu0 0.0
    %406 = vmatpush1.xpose.msra.mxu0 0.0
    %407 = vmatprep.subr.mxu0 0.0
    %408 = vmatpush1.xpose.msra.mxu0 %v375
    %409 = vmatprep.subr.mxu0 0.0
    %410 = vmatpush2.xpose.msra.mxu0 0.0
    %411 = vmatprep.subr.mxu0 0.0
    %412 = vmatpush2.xpose.msra.mxu0 0.0
    %413 = vmatprep.subr.mxu0 0.0
    %414 = vmatpush2.xpose.msra.mxu0 0.0
    %415 = vmatprep.subr.mxu0 0.0
    %416 = vmatpush2.xpose.msra.mxu0 0.0
    %417 = vmatprep.subr.mxu0 0.0
    %418 = vmatpush2.xpose.msra.mxu0 0.0
    %419 = vmatprep.subr.mxu0 0.0
    %420 = vmatpush2.xpose.msra.mxu0 0.0
    %421 = vmatprep.subr.mxu0 0.0
    %422 = vmatpush2.xpose.msra.mxu0 0.0
    %423 = vmatprep.subr.mxu0 0.0
    %424 = vmatpush2.xpose.msra.mxu0 0.0
    %425 = vmatprep.subr.mxu0 0.0
    %426 = vmatpush2.xpose.msra.mxu0 0.0
    %427 = vmatprep.subr.mxu0 0.0
    %428 = vmatpush2.xpose.msra.mxu0 0.0
    %429 = vmatprep.subr.mxu0 0.0
    %430 = vmatpush2.xpose.msra.mxu0 0.0
    %431 = vmatprep.subr.mxu0 0.0
    %432 = vmatpush2.xpose.msra.mxu0 0.0
    %433 = vmatprep.subr.mxu0 0.0
    %434 = vmatpush2.xpose.msra.mxu0 0.0
    %435 = vmatprep.subr.mxu0 0.0
    %436 = vmatpush2.xpose.msra.mxu0 0.0
    %437 = vmatprep.subr.mxu0 0.0
    %438 = vmatpush2.xpose.msra.mxu0 0.0
    %439 = vmatprep.subr.mxu0 0.0
    %440 = vmatpush2.xpose.msra.mxu0 0.0
    %441 = vmatprep.mubr.f32.mxu0 0.0
    %442 = vmatmul.mubr.f32.gmra.mxu0 %v373
    %v443 = vpop.f32.mrf.mxu0
    %v444 = vadd.f32 0.0, %v443
    %v445 = vpop.f32.mrf.mxu0
    %446 = vdwg.mxu0
    %447 = vrot.lane.b32.xlu0 %v209, 96
    %v448 = vpop.permute.xlu0 %447
    %v449 = vsel %vm220, %v209, 0
    %v451 = vsel %vm220, %v448, 0
    %453 = vmatprep.subr.mxu0 0.0
    %454 = vmatpush1.xpose.msra.mxu0 0.0
    %455 = vmatprep.subr.mxu0 0.0
    %456 = vmatpush1.xpose.msra.mxu0 0.0
    %457 = vmatprep.subr.mxu0 0.0
    %458 = vmatpush1.xpose.msra.mxu0 0.0
    %459 = vmatprep.subr.mxu0 0.0
    %460 = vmatpush1.xpose.msra.mxu0 0.0
    %461 = vmatprep.subr.mxu0 0.0
    %462 = vmatpush1.xpose.msra.mxu0 0.0
    %463 = vmatprep.subr.mxu0 0.0
    %464 = vmatpush1.xpose.msra.mxu0 0.0
    %465 = vmatprep.subr.mxu0 0.0
    %466 = vmatpush1.xpose.msra.mxu0 0.0
    %467 = vmatprep.subr.mxu0 0.0
    %468 = vmatpush1.xpose.msra.mxu0 0.0
    %469 = vmatprep.subr.mxu0 0.0
    %470 = vmatpush1.xpose.msra.mxu0 0.0
    %471 = vmatprep.subr.mxu0 0.0
    %472 = vmatpush1.xpose.msra.mxu0 0.0
    %473 = vmatprep.subr.mxu0 0.0
    %474 = vmatpush1.xpose.msra.mxu0 0.0
    %475 = vmatprep.subr.mxu0 0.0
    %476 = vmatpush1.xpose.msra.mxu0 0.0
    %477 = vmatprep.subr.mxu0 0.0
    %478 = vmatpush1.xpose.msra.mxu0 0.0
    %479 = vmatprep.subr.mxu0 0.0
    %480 = vmatpush1.xpose.msra.mxu0 0.0
    %481 = vmatprep.subr.mxu0 0.0
    %482 = vmatpush1.xpose.msra.mxu0 0.0
    %483 = vmatprep.subr.mxu0 0.0
    %484 = vmatpush1.xpose.msra.mxu0 %v451
    %485 = vmatprep.subr.mxu0 0.0
    %486 = vmatpush2.xpose.msra.mxu0 0.0
    %487 = vmatprep.subr.mxu0 0.0
    %488 = vmatpush2.xpose.msra.mxu0 0.0
    %489 = vmatprep.subr.mxu0 0.0
    %490 = vmatpush2.xpose.msra.mxu0 0.0
    %491 = vmatprep.subr.mxu0 0.0
    %492 = vmatpush2.xpose.msra.mxu0 0.0
    %493 = vmatprep.subr.mxu0 0.0
    %494 = vmatpush2.xpose.msra.mxu0 0.0
    %495 = vmatprep.subr.mxu0 0.0
    %496 = vmatpush2.xpose.msra.mxu0 0.0
    %497 = vmatprep.subr.mxu0 0.0
    %498 = vmatpush2.xpose.msra.mxu0 0.0
    %499 = vmatprep.subr.mxu0 0.0
    %500 = vmatpush2.xpose.msra.mxu0 0.0
    %501 = vmatprep.subr.mxu0 0.0
    %502 = vmatpush2.xpose.msra.mxu0 0.0
    %503 = vmatprep.subr.mxu0 0.0
    %504 = vmatpush2.xpose.msra.mxu0 0.0
    %505 = vmatprep.subr.mxu0 0.0
    %506 = vmatpush2.xpose.msra.mxu0 0.0
    %507 = vmatprep.subr.mxu0 0.0
    %508 = vmatpush2.xpose.msra.mxu0 0.0
    %509 = vmatprep.subr.mxu0 0.0
    %510 = vmatpush2.xpose.msra.mxu0 0.0
    %511 = vmatprep.subr.mxu0 0.0
    %512 = vmatpush2.xpose.msra.mxu0 0.0
    %513 = vmatprep.subr.mxu0 0.0
    %514 = vmatpush2.xpose.msra.mxu0 0.0
    %515 = vmatprep.subr.mxu0 0.0
    %516 = vmatpush2.xpose.msra.mxu0 0.0
    %517 = vmatprep.mubr.f32.mxu0 0.0
    %518 = vmatmul.mubr.f32.gmra.mxu0 %v449
    %v519 = vpop.f32.mrf.mxu0
    %v520 = vadd.f32 0.0, %v519
    %v521 = vpop.f32.mrf.mxu0
    %522 = vdwg.mxu0
    %523 = vrot.lane.b32.xlu0 %v211, 96
    %v524 = vpop.permute.xlu0 %523
    %v525 = vsel %vm220, %v211, 0
    %v527 = vsel %vm220, %v524, 0
    %529 = vmatprep.subr.mxu0 0.0
    %530 = vmatpush1.xpose.msra.mxu0 0.0
    %531 = vmatprep.subr.mxu0 0.0
    %532 = vmatpush1.xpose.msra.mxu0 0.0
    %533 = vmatprep.subr.mxu0 0.0
    %534 = vmatpush1.xpose.msra.mxu0 0.0
    %535 = vmatprep.subr.mxu0 0.0
    %536 = vmatpush1.xpose.msra.mxu0 0.0
    %537 = vmatprep.subr.mxu0 0.0
    %538 = vmatpush1.xpose.msra.mxu0 0.0
    %539 = vmatprep.subr.mxu0 0.0
    %540 = vmatpush1.xpose.msra.mxu0 0.0
    %541 = vmatprep.subr.mxu0 0.0
    %542 = vmatpush1.xpose.msra.mxu0 0.0
    %543 = vmatprep.subr.mxu0 0.0
    %544 = vmatpush1.xpose.msra.mxu0 0.0
    %545 = vmatprep.subr.mxu0 0.0
    %546 = vmatpush1.xpose.msra.mxu0 0.0
    %547 = vmatprep.subr.mxu0 0.0
    %548 = vmatpush1.xpose.msra.mxu0 0.0
    %549 = vmatprep.subr.mxu0 0.0
    %550 = vmatpush1.xpose.msra.mxu0 0.0
    %551 = vmatprep.subr.mxu0 0.0
    %552 = vmatpush1.xpose.msra.mxu0 0.0
    %553 = vmatprep.subr.mxu0 0.0
    %554 = vmatpush1.xpose.msra.mxu0 0.0
    %555 = vmatprep.subr.mxu0 0.0
    %556 = vmatpush1.xpose.msra.mxu0 0.0
    %557 = vmatprep.subr.mxu0 0.0
    %558 = vmatpush1.xpose.msra.mxu0 0.0
    %559 = vmatprep.subr.mxu0 0.0
    %560 = vmatpush1.xpose.msra.mxu0 %v527
    %561 = vmatprep.subr.mxu0 0.0
    %562 = vmatpush2.xpose.msra.mxu0 0.0
    %563 = vmatprep.subr.mxu0 0.0
    %564 = vmatpush2.xpose.msra.mxu0 0.0
    %565 = vmatprep.subr.mxu0 0.0
    %566 = vmatpush2.xpose.msra.mxu0 0.0
    %567 = vmatprep.subr.mxu0 0.0
    %568 = vmatpush2.xpose.msra.mxu0 0.0
    %569 = vmatprep.subr.mxu0 0.0
    %570 = vmatpush2.xpose.msra.mxu0 0.0
    %571 = vmatprep.subr.mxu0 0.0
    %572 = vmatpush2.xpose.msra.mxu0 0.0
    %573 = vmatprep.subr.mxu0 0.0
    %574 = vmatpush2.xpose.msra.mxu0 0.0
    %575 = vmatprep.subr.mxu0 0.0
    %576 = vmatpush2.xpose.msra.mxu0 0.0
    %577 = vmatprep.subr.mxu0 0.0
    %578 = vmatpush2.xpose.msra.mxu0 0.0
    %579 = vmatprep.subr.mxu0 0.0
    %580 = vmatpush2.xpose.msra.mxu0 0.0
    %581 = vmatprep.subr.mxu0 0.0
    %582 = vmatpush2.xpose.msra.mxu0 0.0
    %583 = vmatprep.subr.mxu0 0.0
    %584 = vmatpush2.xpose.msra.mxu0 0.0
    %585 = vmatprep.subr.mxu0 0.0
    %586 = vmatpush2.xpose.msra.mxu0 0.0
    %587 = vmatprep.subr.mxu0 0.0
    %588 = vmatpush2.xpose.msra.mxu0 0.0
    %589 = vmatprep.subr.mxu0 0.0
    %590 = vmatpush2.xpose.msra.mxu0 0.0
    %591 = vmatprep.subr.mxu0 0.0
    %592 = vmatpush2.xpose.msra.mxu0 0.0
    %593 = vmatprep.mubr.f32.mxu0 0.0
    %594 = vmatmul.mubr.f32.gmra.mxu0 %v525
    %v595 = vpop.f32.mrf.mxu0
    %v596 = vadd.f32 0.0, %v595
    %v597 = vpop.f32.mrf.mxu0
    %598 = vdwg.mxu0
    %599 = vrot.lane.b32.xlu0 %v213, 96
    %v600 = vpop.permute.xlu0 %599
    %v601 = vsel %vm220, %v213, 0
    %v603 = vsel %vm220, %v600, 0
    %605 = vmatprep.subr.mxu0 0.0
    %606 = vmatpush1.xpose.msra.mxu0 0.0
    %607 = vmatprep.subr.mxu0 0.0
    %608 = vmatpush1.xpose.msra.mxu0 0.0
    %609 = vmatprep.subr.mxu0 0.0
    %610 = vmatpush1.xpose.msra.mxu0 0.0
    %611 = vmatprep.subr.mxu0 0.0
    %612 = vmatpush1.xpose.msra.mxu0 0.0
    %613 = vmatprep.subr.mxu0 0.0
    %614 = vmatpush1.xpose.msra.mxu0 0.0
    %615 = vmatprep.subr.mxu0 0.0
    %616 = vmatpush1.xpose.msra.mxu0 0.0
    %617 = vmatprep.subr.mxu0 0.0
    %618 = vmatpush1.xpose.msra.mxu0 0.0
    %619 = vmatprep.subr.mxu0 0.0
    %620 = vmatpush1.xpose.msra.mxu0 0.0
    %621 = vmatprep.subr.mxu0 0.0
    %622 = vmatpush1.xpose.msra.mxu0 0.0
    %623 = vmatprep.subr.mxu0 0.0
    %624 = vmatpush1.xpose.msra.mxu0 0.0
    %625 = vmatprep.subr.mxu0 0.0
    %626 = vmatpush1.xpose.msra.mxu0 0.0
    %627 = vmatprep.subr.mxu0 0.0
    %628 = vmatpush1.xpose.msra.mxu0 0.0
    %629 = vmatprep.subr.mxu0 0.0
    %630 = vmatpush1.xpose.msra.mxu0 0.0
    %631 = vmatprep.subr.mxu0 0.0
    %632 = vmatpush1.xpose.msra.mxu0 0.0
    %633 = vmatprep.subr.mxu0 0.0
    %634 = vmatpush1.xpose.msra.mxu0 0.0
    %635 = vmatprep.subr.mxu0 0.0
    %636 = vmatpush1.xpose.msra.mxu0 %v603
    %637 = vmatprep.subr.mxu0 0.0
    %638 = vmatpush2.xpose.msra.mxu0 0.0
    %639 = vmatprep.subr.mxu0 0.0
    %640 = vmatpush2.xpose.msra.mxu0 0.0
    %641 = vmatprep.subr.mxu0 0.0
    %642 = vmatpush2.xpose.msra.mxu0 0.0
    %643 = vmatprep.subr.mxu0 0.0
    %644 = vmatpush2.xpose.msra.mxu0 0.0
    %645 = vmatprep.subr.mxu0 0.0
    %646 = vmatpush2.xpose.msra.mxu0 0.0
    %647 = vmatprep.subr.mxu0 0.0
    %648 = vmatpush2.xpose.msra.mxu0 0.0
    %649 = vmatprep.subr.mxu0 0.0
    %650 = vmatpush2.xpose.msra.mxu0 0.0
    %651 = vmatprep.subr.mxu0 0.0
    %652 = vmatpush2.xpose.msra.mxu0 0.0
    %653 = vmatprep.subr.mxu0 0.0
    %654 = vmatpush2.xpose.msra.mxu0 0.0
    %655 = vmatprep.subr.mxu0 0.0
    %656 = vmatpush2.xpose.msra.mxu0 0.0
    %657 = vmatprep.subr.mxu0 0.0
    %658 = vmatpush2.xpose.msra.mxu0 0.0
    %659 = vmatprep.subr.mxu0 0.0
    %660 = vmatpush2.xpose.msra.mxu0 0.0
    %661 = vmatprep.subr.mxu0 0.0
    %662 = vmatpush2.xpose.msra.mxu0 0.0
    %663 = vmatprep.subr.mxu0 0.0
    %664 = vmatpush2.xpose.msra.mxu0 0.0
    %665 = vmatprep.subr.mxu0 0.0
    %666 = vmatpush2.xpose.msra.mxu0 0.0
    %667 = vmatprep.subr.mxu0 0.0
    %668 = vmatpush2.xpose.msra.mxu0 0.0
    %669 = vmatprep.mubr.f32.mxu0 0.0
    %670 = vmatmul.mubr.f32.gmra.mxu0 %v601
    %v671 = vpop.f32.mrf.mxu0
    %v672 = vadd.f32 0.0, %v671
    %v673 = vpop.f32.mrf.mxu0
    %674 = vdwg.mxu0
    %675 = vrot.lane.b32.xlu0 %v215, 96
    %v676 = vpop.permute.xlu0 %675
    %v677 = vsel %vm220, %v215, 0
    %v679 = vsel %vm220, %v676, 0
    %681 = vmatprep.subr.mxu0 0.0
    %682 = vmatpush1.xpose.msra.mxu0 0.0
    %683 = vmatprep.subr.mxu0 0.0
    %684 = vmatpush1.xpose.msra.mxu0 0.0
    %685 = vmatprep.subr.mxu0 0.0
    %686 = vmatpush1.xpose.msra.mxu0 0.0
    %687 = vmatprep.subr.mxu0 0.0
    %688 = vmatpush1.xpose.msra.mxu0 0.0
    %689 = vmatprep.subr.mxu0 0.0
    %690 = vmatpush1.xpose.msra.mxu0 0.0
    %691 = vmatprep.subr.mxu0 0.0
    %692 = vmatpush1.xpose.msra.mxu0 0.0
    %693 = vmatprep.subr.mxu0 0.0
    %694 = vmatpush1.xpose.msra.mxu0 0.0
    %695 = vmatprep.subr.mxu0 0.0
    %696 = vmatpush1.xpose.msra.mxu0 0.0
    %697 = vmatprep.subr.mxu0 0.0
    %698 = vmatpush1.xpose.msra.mxu0 0.0
    %699 = vmatprep.subr.mxu0 0.0
    %700 = vmatpush1.xpose.msra.mxu0 0.0
    %701 = vmatprep.subr.mxu0 0.0
    %702 = vmatpush1.xpose.msra.mxu0 0.0
    %703 = vmatprep.subr.mxu0 0.0
    %704 = vmatpush1.xpose.msra.mxu0 0.0
    %705 = vmatprep.subr.mxu0 0.0
    %706 = vmatpush1.xpose.msra.mxu0 0.0
    %707 = vmatprep.subr.mxu0 0.0
    %708 = vmatpush1.xpose.msra.mxu0 0.0
    %709 = vmatprep.subr.mxu0 0.0
    %710 = vmatpush1.xpose.msra.mxu0 0.0
    %711 = vmatprep.subr.mxu0 0.0
    %712 = vmatpush1.xpose.msra.mxu0 %v679
    %713 = vmatprep.subr.mxu0 0.0
    %714 = vmatpush2.xpose.msra.mxu0 0.0
    %715 = vmatprep.subr.mxu0 0.0
    %716 = vmatpush2.xpose.msra.mxu0 0.0
    %717 = vmatprep.subr.mxu0 0.0
    %718 = vmatpush2.xpose.msra.mxu0 0.0
    %719 = vmatprep.subr.mxu0 0.0
    %720 = vmatpush2.xpose.msra.mxu0 0.0
    %721 = vmatprep.subr.mxu0 0.0
    %722 = vmatpush2.xpose.msra.mxu0 0.0
    %723 = vmatprep.subr.mxu0 0.0
    %724 = vmatpush2.xpose.msra.mxu0 0.0
    %725 = vmatprep.subr.mxu0 0.0
    %726 = vmatpush2.xpose.msra.mxu0 0.0
    %727 = vmatprep.subr.mxu0 0.0
    %728 = vmatpush2.xpose.msra.mxu0 0.0
    %729 = vmatprep.subr.mxu0 0.0
    %730 = vmatpush2.xpose.msra.mxu0 0.0
    %731 = vmatprep.subr.mxu0 0.0
    %732 = vmatpush2.xpose.msra.mxu0 0.0
    %733 = vmatprep.subr.mxu0 0.0
    %734 = vmatpush2.xpose.msra.mxu0 0.0
    %735 = vmatprep.subr.mxu0 0.0
    %736 = vmatpush2.xpose.msra.mxu0 0.0
    %737 = vmatprep.subr.mxu0 0.0
    %738 = vmatpush2.xpose.msra.mxu0 0.0
    %739 = vmatprep.subr.mxu0 0.0
    %740 = vmatpush2.xpose.msra.mxu0 0.0
    %741 = vmatprep.subr.mxu0 0.0
    %742 = vmatpush2.xpose.msra.mxu0 0.0
    %743 = vmatprep.subr.mxu0 0.0
    %744 = vmatpush2.xpose.msra.mxu0 0.0
    %745 = vmatprep.mubr.f32.mxu0 0.0
    %746 = vmatmul.mubr.f32.gmra.mxu0 %v677
    %v747 = vpop.f32.mrf.mxu0
    %v748 = vadd.f32 0.0, %v747
    %v749 = vpop.f32.mrf.mxu0
    %750 = vdwg.mxu0
    %751 = vrot.lane.b32.xlu0 %v217, 96
    %v752 = vpop.permute.xlu0 %751
    %v753 = vsel %vm220, %v217, 0
    %v755 = vsel %vm220, %v752, 0
    %757 = vmatprep.subr.mxu0 0.0
    %758 = vmatpush1.xpose.msra.mxu0 0.0
    %759 = vmatprep.subr.mxu0 0.0
    %760 = vmatpush1.xpose.msra.mxu0 0.0
    %761 = vmatprep.subr.mxu0 0.0
    %762 = vmatpush1.xpose.msra.mxu0 0.0
    %763 = vmatprep.subr.mxu0 0.0
    %764 = vmatpush1.xpose.msra.mxu0 0.0
    %765 = vmatprep.subr.mxu0 0.0
    %766 = vmatpush1.xpose.msra.mxu0 0.0
    %767 = vmatprep.subr.mxu0 0.0
    %768 = vmatpush1.xpose.msra.mxu0 0.0
    %769 = vmatprep.subr.mxu0 0.0
    %770 = vmatpush1.xpose.msra.mxu0 0.0
    %771 = vmatprep.subr.mxu0 0.0
    %772 = vmatpush1.xpose.msra.mxu0 0.0
    %773 = vmatprep.subr.mxu0 0.0
    %774 = vmatpush1.xpose.msra.mxu0 0.0
    %775 = vmatprep.subr.mxu0 0.0
    %776 = vmatpush1.xpose.msra.mxu0 0.0
    %777 = vmatprep.subr.mxu0 0.0
    %778 = vmatpush1.xpose.msra.mxu0 0.0
    %779 = vmatprep.subr.mxu0 0.0
    %780 = vmatpush1.xpose.msra.mxu0 0.0
    %781 = vmatprep.subr.mxu0 0.0
    %782 = vmatpush1.xpose.msra.mxu0 0.0
    %783 = vmatprep.subr.mxu0 0.0
    %784 = vmatpush1.xpose.msra.mxu0 0.0
    %785 = vmatprep.subr.mxu0 0.0
    %786 = vmatpush1.xpose.msra.mxu0 0.0
    %787 = vmatprep.subr.mxu0 0.0
    %788 = vmatpush1.xpose.msra.mxu0 %v755
    %789 = vmatprep.subr.mxu0 0.0
    %790 = vmatpush2.xpose.msra.mxu0 0.0
    %791 = vmatprep.subr.mxu0 0.0
    %792 = vmatpush2.xpose.msra.mxu0 0.0
    %793 = vmatprep.subr.mxu0 0.0
    %794 = vmatpush2.xpose.msra.mxu0 0.0
    %795 = vmatprep.subr.mxu0 0.0
    %796 = vmatpush2.xpose.msra.mxu0 0.0
    %797 = vmatprep.subr.mxu0 0.0
    %798 = vmatpush2.xpose.msra.mxu0 0.0
    %799 = vmatprep.subr.mxu0 0.0
    %800 = vmatpush2.xpose.msra.mxu0 0.0
    %801 = vmatprep.subr.mxu0 0.0
    %802 = vmatpush2.xpose.msra.mxu0 0.0
    %803 = vmatprep.subr.mxu0 0.0
    %804 = vmatpush2.xpose.msra.mxu0 0.0
    %805 = vmatprep.subr.mxu0 0.0
    %806 = vmatpush2.xpose.msra.mxu0 0.0
    %807 = vmatprep.subr.mxu0 0.0
    %808 = vmatpush2.xpose.msra.mxu0 0.0
    %809 = vmatprep.subr.mxu0 0.0
    %810 = vmatpush2.xpose.msra.mxu0 0.0
    %811 = vmatprep.subr.mxu0 0.0
    %812 = vmatpush2.xpose.msra.mxu0 0.0
    %813 = vmatprep.subr.mxu0 0.0
    %814 = vmatpush2.xpose.msra.mxu0 0.0
    %815 = vmatprep.subr.mxu0 0.0
    %816 = vmatpush2.xpose.msra.mxu0 0.0
    %817 = vmatprep.subr.mxu0 0.0
    %818 = vmatpush2.xpose.msra.mxu0 0.0
    %819 = vmatprep.subr.mxu0 0.0
    %820 = vmatpush2.xpose.msra.mxu0 0.0
    %821 = vmatprep.mubr.f32.mxu0 0.0
    %822 = vmatmul.mubr.f32.gmra.mxu0 %v753
    %v823 = vpop.f32.mrf.mxu0
    %v824 = vadd.f32 0.0, %v823
    %v825 = vpop.f32.mrf.mxu0
    %826 = vdwg.mxu0
    %v827 = vsel %vm220, %v292, -inf
    %828 = vmax.xlane.f32.xlu0 %v827
    %v829 = vpop.xlane.xlu0 %828
    %v830 = vsel %vm220, %v368, -inf
    %831 = vmax.xlane.f32.xlu0 %v830
    %v832 = vpop.xlane.xlu0 %831
    %v833 = vsel %vm220, %v444, -inf
    %834 = vmax.xlane.f32.xlu0 %v833
    %v835 = vpop.xlane.xlu0 %834
    %v836 = vsel %vm220, %v520, -inf
    %837 = vmax.xlane.f32.xlu0 %v836
    %v838 = vpop.xlane.xlu0 %837
    %v839 = vsel %vm220, %v596, -inf
    %840 = vmax.xlane.f32.xlu0 %v839
    %v841 = vpop.xlane.xlu0 %840
    %v842 = vsel %vm220, %v672, -inf
    %843 = vmax.xlane.f32.xlu0 %v842
    %v844 = vpop.xlane.xlu0 %843
    %v845 = vsel %vm220, %v748, -inf
    %846 = vmax.xlane.f32.xlu0 %v845
    %v847 = vpop.xlane.xlu0 %846
    %v848 = vsel %vm220, %v824, -inf
    %849 = vmax.xlane.f32.xlu0 %v848
    %v850 = vpop.xlane.xlu0 %849
    %v851 = vsub.f32 %v292, %v829
    %v852 = vsub.f32 %v368, %v832
    %v853 = vsub.f32 %v444, %v835
    %v854 = vsub.f32 %v520, %v838
    %v855 = vsub.f32 %v596, %v841
    %v856 = vsub.f32 %v672, %v844
    %v857 = vsub.f32 %v748, %v847
    %v858 = vsub.f32 %v824, %v850
    %v859 = vmul.f32 %v851, 1.442695
    %v860 = vpow.pop %v859
    %v861 = vmul.f32 %v852, 1.442695
    %v862 = vpow.pop %v861
    %v863 = vmul.f32 %v853, 1.442695
    %v864 = vpow.pop %v863
    %v865 = vmul.f32 %v854, 1.442695
    %v866 = vpow.pop %v865
    %v867 = vmul.f32 %v855, 1.442695
    %v868 = vpow.pop %v867
    %v869 = vmul.f32 %v856, 1.442695
    %v870 = vpow.pop %v869
    %v871 = vmul.f32 %v857, 1.442695
    %v872 = vpow.pop %v871
    %v873 = vmul.f32 %v858, 1.442695
    %v874 = vpow.pop %v873
    %v875 = vsel %vm220, %v860, 0.0
    %876 = vadd.xlane.f32.xlu0 %v875
    %v877 = vpop.xlane.xlu0 %876
    %v878 = vsel %vm220, %v862, 0.0
    %879 = vadd.xlane.f32.xlu0 %v878
    %v880 = vpop.xlane.xlu0 %879
    %v881 = vsel %vm220, %v864, 0.0
    %882 = vadd.xlane.f32.xlu0 %v881
    %v883 = vpop.xlane.xlu0 %882
    %v884 = vsel %vm220, %v866, 0.0
    %885 = vadd.xlane.f32.xlu0 %v884
    %v886 = vpop.xlane.xlu0 %885
    %v887 = vsel %vm220, %v868, 0.0
    %888 = vadd.xlane.f32.xlu0 %v887
    %v889 = vpop.xlane.xlu0 %888
    %v890 = vsel %vm220, %v870, 0.0
    %891 = vadd.xlane.f32.xlu0 %v890
    %v892 = vpop.xlane.xlu0 %891
    %v893 = vsel %vm220, %v872, 0.0
    %894 = vadd.xlane.f32.xlu0 %v893
    %v895 = vpop.xlane.xlu0 %894
    %v896 = vsel %vm220, %v874, 0.0
    %897 = vadd.xlane.f32.xlu0 %v896
    %v898 = vpop.xlane.xlu0 %897
    %v899 = vrcp.pop %v877
    %v900 = vrcp.pop %v880
    %v901 = vrcp.pop %v883
    %v902 = vrcp.pop %v886
    %v903 = vrcp.pop %v889
    %v904 = vrcp.pop %v892
    %v905 = vrcp.pop %v895
    %v906 = vrcp.pop %v898
    %v907 = vmul.f32 %v860, %v899
    %v908 = vmul.f32 %v862, %v900
    %v909 = vmul.f32 %v864, %v901
    %v910 = vmul.f32 %v866, %v902
    %v911 = vmul.f32 %v868, %v903
    %v912 = vmul.f32 %v870, %v904
    %v913 = vmul.f32 %v872, %v905
    %v914 = vmul.f32 %v874, %v906
    %915 = vrot.lane.b32.xlu0 %v196, 64
    %v916 = vpop.permute.xlu0 %915
    %v919 = vsel %vm220, %v907, 0
    %921 = vmatprep.subr.mxu0 0.0
    %922 = vmatpush1.msra.mxu0 0.0
    %923 = vmatprep.subr.mxu0 0.0
    %924 = vmatpush1.msra.mxu0 0.0
    %925 = vmatprep.subr.mxu0 0.0
    %926 = vmatpush1.msra.mxu0 0.0
    %927 = vmatprep.subr.mxu0 0.0
    %928 = vmatpush1.msra.mxu0 0.0
    %929 = vmatprep.subr.mxu0 0.0
    %930 = vmatpush1.msra.mxu0 0.0
    %931 = vmatprep.subr.mxu0 0.0
    %932 = vmatpush1.msra.mxu0 0.0
    %933 = vmatprep.subr.mxu0 0.0
    %934 = vmatpush1.msra.mxu0 0.0
    %935 = vmatprep.subr.mxu0 0.0
    %936 = vmatpush1.msra.mxu0 0.0
    %937 = vmatprep.subr.mxu0 0.0
    %938 = vmatpush1.msra.mxu0 0.0
    %939 = vmatprep.subr.mxu0 0.0
    %940 = vmatpush1.msra.mxu0 0.0
    %941 = vmatprep.subr.mxu0 0.0
    %942 = vmatpush1.msra.mxu0 0.0
    %943 = vmatprep.subr.mxu0 0.0
    %944 = vmatpush1.msra.mxu0 0.0
    %945 = vmatprep.subr.mxu0 0.0
    %946 = vmatpush1.msra.mxu0 0.0
    %947 = vmatprep.subr.mxu0 0.0
    %948 = vmatpush1.msra.mxu0 0.0
    %949 = vmatprep.subr.mxu0 0.0
    %950 = vmatpush1.msra.mxu0 0.0
    %951 = vmatprep.subr.mxu0 0.0
    %952 = vmatpush1.msra.mxu0 %v916
    %953 = vmatprep.subr.mxu0 0.0
    %954 = vmatpush2.msra.mxu0 0.0
    %955 = vmatprep.subr.mxu0 0.0
    %956 = vmatpush2.msra.mxu0 0.0
    %957 = vmatprep.subr.mxu0 0.0
    %958 = vmatpush2.msra.mxu0 0.0
    %959 = vmatprep.subr.mxu0 0.0
    %960 = vmatpush2.msra.mxu0 0.0
    %961 = vmatprep.subr.mxu0 0.0
    %962 = vmatpush2.msra.mxu0 0.0
    %963 = vmatprep.subr.mxu0 0.0
    %964 = vmatpush2.msra.mxu0 0.0
    %965 = vmatprep.subr.mxu0 0.0
    %966 = vmatpush2.msra.mxu0 0.0
    %967 = vmatprep.subr.mxu0 0.0
    %968 = vmatpush2.msra.mxu0 0.0
    %969 = vmatprep.subr.mxu0 0.0
    %970 = vmatpush2.msra.mxu0 0.0
    %971 = vmatprep.subr.mxu0 0.0
    %972 = vmatpush2.msra.mxu0 0.0
    %973 = vmatprep.subr.mxu0 0.0
    %974 = vmatpush2.msra.mxu0 0.0
    %975 = vmatprep.subr.mxu0 0.0
    %976 = vmatpush2.msra.mxu0 0.0
    %977 = vmatprep.subr.mxu0 0.0
    %978 = vmatpush2.msra.mxu0 0.0
    %979 = vmatprep.subr.mxu0 0.0
    %980 = vmatpush2.msra.mxu0 0.0
    %981 = vmatprep.subr.mxu0 0.0
    %982 = vmatpush2.msra.mxu0 0.0
    %983 = vmatprep.subr.mxu0 0.0
    %984 = vmatpush2.msra.mxu0 0.0
    %985 = vmatprep.mubr.f32.mxu0 0.0
    %986 = vmatmul.mubr.f32.gmra.mxu0 %v919
    %v987 = vpop.f32.mrf.mxu0
    %v988 = vadd.f32 0.0, %v987
    %v989 = vpop.f32.mrf.mxu0
    %990 = vdwg.mxu0
    %991 = vrot.lane.b32.xlu0 %v201, 64
    %v992 = vpop.permute.xlu0 %991
    %v995 = vsel %vm220, %v908, 0
    %997 = vmatprep.subr.mxu0 0.0
    %998 = vmatpush1.msra.mxu0 0.0
    %999 = vmatprep.subr.mxu0 0.0
    %1000 = vmatpush1.msra.mxu0 0.0
    %1001 = vmatprep.subr.mxu0 0.0
    %1002 = vmatpush1.msra.mxu0 0.0
    %1003 = vmatprep.subr.mxu0 0.0
    %1004 = vmatpush1.msra.mxu0 0.0
    %1005 = vmatprep.subr.mxu0 0.0
    %1006 = vmatpush1.msra.mxu0 0.0
    %1007 = vmatprep.subr.mxu0 0.0
    %1008 = vmatpush1.msra.mxu0 0.0
    %1009 = vmatprep.subr.mxu0 0.0
    %1010 = vmatpush1.msra.mxu0 0.0
    %1011 = vmatprep.subr.mxu0 0.0
    %1012 = vmatpush1.msra.mxu0 0.0
    %1013 = vmatprep.subr.mxu0 0.0
    %1014 = vmatpush1.msra.mxu0 0.0
    %1015 = vmatprep.subr.mxu0 0.0
    %1016 = vmatpush1.msra.mxu0 0.0
    %1017 = vmatprep.subr.mxu0 0.0
    %1018 = vmatpush1.msra.mxu0 0.0
    %1019 = vmatprep.subr.mxu0 0.0
    %1020 = vmatpush1.msra.mxu0 0.0
    %1021 = vmatprep.subr.mxu0 0.0
    %1022 = vmatpush1.msra.mxu0 0.0
    %1023 = vmatprep.subr.mxu0 0.0
    %1024 = vmatpush1.msra.mxu0 0.0
    %1025 = vmatprep.subr.mxu0 0.0
    %1026 = vmatpush1.msra.mxu0 0.0
    %1027 = vmatprep.subr.mxu0 0.0
    %1028 = vmatpush1.msra.mxu0 %v992
    %1029 = vmatprep.subr.mxu0 0.0
    %1030 = vmatpush2.msra.mxu0 0.0
    %1031 = vmatprep.subr.mxu0 0.0
    %1032 = vmatpush2.msra.mxu0 0.0
    %1033 = vmatprep.subr.mxu0 0.0
    %1034 = vmatpush2.msra.mxu0 0.0
    %1035 = vmatprep.subr.mxu0 0.0
    %1036 = vmatpush2.msra.mxu0 0.0
    %1037 = vmatprep.subr.mxu0 0.0
    %1038 = vmatpush2.msra.mxu0 0.0
    %1039 = vmatprep.subr.mxu0 0.0
    %1040 = vmatpush2.msra.mxu0 0.0
    %1041 = vmatprep.subr.mxu0 0.0
    %1042 = vmatpush2.msra.mxu0 0.0
    %1043 = vmatprep.subr.mxu0 0.0
    %1044 = vmatpush2.msra.mxu0 0.0
    %1045 = vmatprep.subr.mxu0 0.0
    %1046 = vmatpush2.msra.mxu0 0.0
    %1047 = vmatprep.subr.mxu0 0.0
    %1048 = vmatpush2.msra.mxu0 0.0
    %1049 = vmatprep.subr.mxu0 0.0
    %1050 = vmatpush2.msra.mxu0 0.0
    %1051 = vmatprep.subr.mxu0 0.0
    %1052 = vmatpush2.msra.mxu0 0.0
    %1053 = vmatprep.subr.mxu0 0.0
    %1054 = vmatpush2.msra.mxu0 0.0
    %1055 = vmatprep.subr.mxu0 0.0
    %1056 = vmatpush2.msra.mxu0 0.0
    %1057 = vmatprep.subr.mxu0 0.0
    %1058 = vmatpush2.msra.mxu0 0.0
    %1059 = vmatprep.subr.mxu0 0.0
    %1060 = vmatpush2.msra.mxu0 0.0
    %1061 = vmatprep.mubr.f32.mxu0 0.0
    %1062 = vmatmul.mubr.f32.gmra.mxu0 %v995
    %v1063 = vpop.f32.mrf.mxu0
    %v1064 = vadd.f32 0.0, %v1063
    %v1065 = vpop.f32.mrf.mxu0
    %1066 = vdwg.mxu0
    %1067 = vrot.lane.b32.xlu0 %v207, 64
    %v1068 = vpop.permute.xlu0 %1067
    %v1071 = vsel %vm220, %v909, 0
    %1073 = vmatprep.subr.mxu0 0.0
    %1074 = vmatpush1.msra.mxu0 0.0
    %1075 = vmatprep.subr.mxu0 0.0
    %1076 = vmatpush1.msra.mxu0 0.0
    %1077 = vmatprep.subr.mxu0 0.0
    %1078 = vmatpush1.msra.mxu0 0.0
    %1079 = vmatprep.subr.mxu0 0.0
    %1080 = vmatpush1.msra.mxu0 0.0
    %1081 = vmatprep.subr.mxu0 0.0
    %1082 = vmatpush1.msra.mxu0 0.0
    %1083 = vmatprep.subr.mxu0 0.0
    %1084 = vmatpush1.msra.mxu0 0.0
    %1085 = vmatprep.subr.mxu0 0.0
    %1086 = vmatpush1.msra.mxu0 0.0
    %1087 = vmatprep.subr.mxu0 0.0
    %1088 = vmatpush1.msra.mxu0 0.0
    %1089 = vmatprep.subr.mxu0 0.0
    %1090 = vmatpush1.msra.mxu0 0.0
    %1091 = vmatprep.subr.mxu0 0.0
    %1092 = vmatpush1.msra.mxu0 0.0
    %1093 = vmatprep.subr.mxu0 0.0
    %1094 = vmatpush1.msra.mxu0 0.0
    %1095 = vmatprep.subr.mxu0 0.0
    %1096 = vmatpush1.msra.mxu0 0.0
    %1097 = vmatprep.subr.mxu0 0.0
    %1098 = vmatpush1.msra.mxu0 0.0
    %1099 = vmatprep.subr.mxu0 0.0
    %1100 = vmatpush1.msra.mxu0 0.0
    %1101 = vmatprep.subr.mxu0 0.0
    %1102 = vmatpush1.msra.mxu0 0.0
    %1103 = vmatprep.subr.mxu0 0.0
    %1104 = vmatpush1.msra.mxu0 %v1068
    %1105 = vmatprep.subr.mxu0 0.0
    %1106 = vmatpush2.msra.mxu0 0.0
    %1107 = vmatprep.subr.mxu0 0.0
    %1108 = vmatpush2.msra.mxu0 0.0
    %1109 = vmatprep.subr.mxu0 0.0
    %1110 = vmatpush2.msra.mxu0 0.0
    %1111 = vmatprep.subr.mxu0 0.0
    %1112 = vmatpush2.msra.mxu0 0.0
    %1113 = vmatprep.subr.mxu0 0.0
    %1114 = vmatpush2.msra.mxu0 0.0
    %1115 = vmatprep.subr.mxu0 0.0
    %1116 = vmatpush2.msra.mxu0 0.0
    %1117 = vmatprep.subr.mxu0 0.0
    %1118 = vmatpush2.msra.mxu0 0.0
    %1119 = vmatprep.subr.mxu0 0.0
    %1120 = vmatpush2.msra.mxu0 0.0
    %1121 = vmatprep.subr.mxu0 0.0
    %1122 = vmatpush2.msra.mxu0 0.0
    %1123 = vmatprep.subr.mxu0 0.0
    %1124 = vmatpush2.msra.mxu0 0.0
    %1125 = vmatprep.subr.mxu0 0.0
    %1126 = vmatpush2.msra.mxu0 0.0
    %1127 = vmatprep.subr.mxu0 0.0
    %1128 = vmatpush2.msra.mxu0 0.0
    %1129 = vmatprep.subr.mxu0 0.0
    %1130 = vmatpush2.msra.mxu0 0.0
    %1131 = vmatprep.subr.mxu0 0.0
    %1132 = vmatpush2.msra.mxu0 0.0
    %1133 = vmatprep.subr.mxu0 0.0
    %1134 = vmatpush2.msra.mxu0 0.0
    %1135 = vmatprep.subr.mxu0 0.0
    %1136 = vmatpush2.msra.mxu0 0.0
    %1137 = vmatprep.mubr.f32.mxu0 0.0
    %1138 = vmatmul.mubr.f32.gmra.mxu0 %v1071
    %v1139 = vpop.f32.mrf.mxu0
    %v1140 = vadd.f32 0.0, %v1139
    %v1141 = vpop.f32.mrf.mxu0
    %1142 = vdwg.mxu0
    %1143 = vrot.lane.b32.xlu0 %v209, 64
    %v1144 = vpop.permute.xlu0 %1143
    %v1147 = vsel %vm220, %v910, 0
    %1149 = vmatprep.subr.mxu0 0.0
    %1150 = vmatpush1.msra.mxu0 0.0
    %1151 = vmatprep.subr.mxu0 0.0
    %1152 = vmatpush1.msra.mxu0 0.0
    %1153 = vmatprep.subr.mxu0 0.0
    %1154 = vmatpush1.msra.mxu0 0.0
    %1155 = vmatprep.subr.mxu0 0.0
    %1156 = vmatpush1.msra.mxu0 0.0
    %1157 = vmatprep.subr.mxu0 0.0
    %1158 = vmatpush1.msra.mxu0 0.0
    %1159 = vmatprep.subr.mxu0 0.0
    %1160 = vmatpush1.msra.mxu0 0.0
    %1161 = vmatprep.subr.mxu0 0.0
    %1162 = vmatpush1.msra.mxu0 0.0
    %1163 = vmatprep.subr.mxu0 0.0
    %1164 = vmatpush1.msra.mxu0 0.0
    %1165 = vmatprep.subr.mxu0 0.0
    %1166 = vmatpush1.msra.mxu0 0.0
    %1167 = vmatprep.subr.mxu0 0.0
    %1168 = vmatpush1.msra.mxu0 0.0
    %1169 = vmatprep.subr.mxu0 0.0
    %1170 = vmatpush1.msra.mxu0 0.0
    %1171 = vmatprep.subr.mxu0 0.0
    %1172 = vmatpush1.msra.mxu0 0.0
    %1173 = vmatprep.subr.mxu0 0.0
    %1174 = vmatpush1.msra.mxu0 0.0
    %1175 = vmatprep.subr.mxu0 0.0
    %1176 = vmatpush1.msra.mxu0 0.0
    %1177 = vmatprep.subr.mxu0 0.0
    %1178 = vmatpush1.msra.mxu0 0.0
    %1179 = vmatprep.subr.mxu0 0.0
    %1180 = vmatpush1.msra.mxu0 %v1144
    %1181 = vmatprep.subr.mxu0 0.0
    %1182 = vmatpush2.msra.mxu0 0.0
    %1183 = vmatprep.subr.mxu0 0.0
    %1184 = vmatpush2.msra.mxu0 0.0
    %1185 = vmatprep.subr.mxu0 0.0
    %1186 = vmatpush2.msra.mxu0 0.0
    %1187 = vmatprep.subr.mxu0 0.0
    %1188 = vmatpush2.msra.mxu0 0.0
    %1189 = vmatprep.subr.mxu0 0.0
    %1190 = vmatpush2.msra.mxu0 0.0
    %1191 = vmatprep.subr.mxu0 0.0
    %1192 = vmatpush2.msra.mxu0 0.0
    %1193 = vmatprep.subr.mxu0 0.0
    %1194 = vmatpush2.msra.mxu0 0.0
    %1195 = vmatprep.subr.mxu0 0.0
    %1196 = vmatpush2.msra.mxu0 0.0
    %1197 = vmatprep.subr.mxu0 0.0
    %1198 = vmatpush2.msra.mxu0 0.0
    %1199 = vmatprep.subr.mxu0 0.0
    %1200 = vmatpush2.msra.mxu0 0.0
    %1201 = vmatprep.subr.mxu0 0.0
    %1202 = vmatpush2.msra.mxu0 0.0
    %1203 = vmatprep.subr.mxu0 0.0
    %1204 = vmatpush2.msra.mxu0 0.0
    %1205 = vmatprep.subr.mxu0 0.0
    %1206 = vmatpush2.msra.mxu0 0.0
    %1207 = vmatprep.subr.mxu0 0.0
    %1208 = vmatpush2.msra.mxu0 0.0
    %1209 = vmatprep.subr.mxu0 0.0
    %1210 = vmatpush2.msra.mxu0 0.0
    %1211 = vmatprep.subr.mxu0 0.0
    %1212 = vmatpush2.msra.mxu0 0.0
    %1213 = vmatprep.mubr.f32.mxu0 0.0
    %1214 = vmatmul.mubr.f32.gmra.mxu0 %v1147
    %v1215 = vpop.f32.mrf.mxu0
    %v1216 = vadd.f32 0.0, %v1215
    %v1217 = vpop.f32.mrf.mxu0
    %1218 = vdwg.mxu0
    %1219 = vrot.lane.b32.xlu0 %v211, 64
    %v1220 = vpop.permute.xlu0 %1219
    %v1223 = vsel %vm220, %v911, 0
    %1225 = vmatprep.subr.mxu0 0.0
    %1226 = vmatpush1.msra.mxu0 0.0
    %1227 = vmatprep.subr.mxu0 0.0
    %1228 = vmatpush1.msra.mxu0 0.0
    %1229 = vmatprep.subr.mxu0 0.0
    %1230 = vmatpush1.msra.mxu0 0.0
    %1231 = vmatprep.subr.mxu0 0.0
    %1232 = vmatpush1.msra.mxu0 0.0
    %1233 = vmatprep.subr.mxu0 0.0
    %1234 = vmatpush1.msra.mxu0 0.0
    %1235 = vmatprep.subr.mxu0 0.0
    %1236 = vmatpush1.msra.mxu0 0.0
    %1237 = vmatprep.subr.mxu0 0.0
    %1238 = vmatpush1.msra.mxu0 0.0
    %1239 = vmatprep.subr.mxu0 0.0
    %1240 = vmatpush1.msra.mxu0 0.0
    %1241 = vmatprep.subr.mxu0 0.0
    %1242 = vmatpush1.msra.mxu0 0.0
    %1243 = vmatprep.subr.mxu0 0.0
    %1244 = vmatpush1.msra.mxu0 0.0
    %1245 = vmatprep.subr.mxu0 0.0
    %1246 = vmatpush1.msra.mxu0 0.0
    %1247 = vmatprep.subr.mxu0 0.0
    %1248 = vmatpush1.msra.mxu0 0.0
    %1249 = vmatprep.subr.mxu0 0.0
    %1250 = vmatpush1.msra.mxu0 0.0
    %1251 = vmatprep.subr.mxu0 0.0
    %1252 = vmatpush1.msra.mxu0 0.0
    %1253 = vmatprep.subr.mxu0 0.0
    %1254 = vmatpush1.msra.mxu0 0.0
    %1255 = vmatprep.subr.mxu0 0.0
    %1256 = vmatpush1.msra.mxu0 %v1220
    %1257 = vmatprep.subr.mxu0 0.0
    %1258 = vmatpush2.msra.mxu0 0.0
    %1259 = vmatprep.subr.mxu0 0.0
    %1260 = vmatpush2.msra.mxu0 0.0
    %1261 = vmatprep.subr.mxu0 0.0
    %1262 = vmatpush2.msra.mxu0 0.0
    %1263 = vmatprep.subr.mxu0 0.0
    %1264 = vmatpush2.msra.mxu0 0.0
    %1265 = vmatprep.subr.mxu0 0.0
    %1266 = vmatpush2.msra.mxu0 0.0
    %1267 = vmatprep.subr.mxu0 0.0
    %1268 = vmatpush2.msra.mxu0 0.0
    %1269 = vmatprep.subr.mxu0 0.0
    %1270 = vmatpush2.msra.mxu0 0.0
    %1271 = vmatprep.subr.mxu0 0.0
    %1272 = vmatpush2.msra.mxu0 0.0
    %1273 = vmatprep.subr.mxu0 0.0
    %1274 = vmatpush2.msra.mxu0 0.0
    %1275 = vmatprep.subr.mxu0 0.0
    %1276 = vmatpush2.msra.mxu0 0.0
    %1277 = vmatprep.subr.mxu0 0.0
    %1278 = vmatpush2.msra.mxu0 0.0
    %1279 = vmatprep.subr.mxu0 0.0
    %1280 = vmatpush2.msra.mxu0 0.0
    %1281 = vmatprep.subr.mxu0 0.0
    %1282 = vmatpush2.msra.mxu0 0.0
    %1283 = vmatprep.subr.mxu0 0.0
    %1284 = vmatpush2.msra.mxu0 0.0
    %1285 = vmatprep.subr.mxu0 0.0
    %1286 = vmatpush2.msra.mxu0 0.0
    %1287 = vmatprep.subr.mxu0 0.0
    %1288 = vmatpush2.msra.mxu0 0.0
    %1289 = vmatprep.mubr.f32.mxu0 0.0
    %1290 = vmatmul.mubr.f32.gmra.mxu0 %v1223
    %v1291 = vpop.f32.mrf.mxu0
    %v1292 = vadd.f32 0.0, %v1291
    %v1293 = vpop.f32.mrf.mxu0
    %1294 = vdwg.mxu0
    %1295 = vrot.lane.b32.xlu0 %v213, 64
    %v1296 = vpop.permute.xlu0 %1295
    %v1299 = vsel %vm220, %v912, 0
    %1301 = vmatprep.subr.mxu0 0.0
    %1302 = vmatpush1.msra.mxu0 0.0
    %1303 = vmatprep.subr.mxu0 0.0
    %1304 = vmatpush1.msra.mxu0 0.0
    %1305 = vmatprep.subr.mxu0 0.0
    %1306 = vmatpush1.msra.mxu0 0.0
    %1307 = vmatprep.subr.mxu0 0.0
    %1308 = vmatpush1.msra.mxu0 0.0
    %1309 = vmatprep.subr.mxu0 0.0
    %1310 = vmatpush1.msra.mxu0 0.0
    %1311 = vmatprep.subr.mxu0 0.0
    %1312 = vmatpush1.msra.mxu0 0.0
    %1313 = vmatprep.subr.mxu0 0.0
    %1314 = vmatpush1.msra.mxu0 0.0
    %1315 = vmatprep.subr.mxu0 0.0
    %1316 = vmatpush1.msra.mxu0 0.0
    %1317 = vmatprep.subr.mxu0 0.0
    %1318 = vmatpush1.msra.mxu0 0.0
    %1319 = vmatprep.subr.mxu0 0.0
    %1320 = vmatpush1.msra.mxu0 0.0
    %1321 = vmatprep.subr.mxu0 0.0
    %1322 = vmatpush1.msra.mxu0 0.0
    %1323 = vmatprep.subr.mxu0 0.0
    %1324 = vmatpush1.msra.mxu0 0.0
    %1325 = vmatprep.subr.mxu0 0.0
    %1326 = vmatpush1.msra.mxu0 0.0
    %1327 = vmatprep.subr.mxu0 0.0
    %1328 = vmatpush1.msra.mxu0 0.0
    %1329 = vmatprep.subr.mxu0 0.0
    %1330 = vmatpush1.msra.mxu0 0.0
    %1331 = vmatprep.subr.mxu0 0.0
    %1332 = vmatpush1.msra.mxu0 %v1296
    %1333 = vmatprep.subr.mxu0 0.0
    %1334 = vmatpush2.msra.mxu0 0.0
    %1335 = vmatprep.subr.mxu0 0.0
    %1336 = vmatpush2.msra.mxu0 0.0
    %1337 = vmatprep.subr.mxu0 0.0
    %1338 = vmatpush2.msra.mxu0 0.0
    %1339 = vmatprep.subr.mxu0 0.0
    %1340 = vmatpush2.msra.mxu0 0.0
    %1341 = vmatprep.subr.mxu0 0.0
    %1342 = vmatpush2.msra.mxu0 0.0
    %1343 = vmatprep.subr.mxu0 0.0
    %1344 = vmatpush2.msra.mxu0 0.0
    %1345 = vmatprep.subr.mxu0 0.0
    %1346 = vmatpush2.msra.mxu0 0.0
    %1347 = vmatprep.subr.mxu0 0.0
    %1348 = vmatpush2.msra.mxu0 0.0
    %1349 = vmatprep.subr.mxu0 0.0
    %1350 = vmatpush2.msra.mxu0 0.0
    %1351 = vmatprep.subr.mxu0 0.0
    %1352 = vmatpush2.msra.mxu0 0.0
    %1353 = vmatprep.subr.mxu0 0.0
    %1354 = vmatpush2.msra.mxu0 0.0
    %1355 = vmatprep.subr.mxu0 0.0
    %1356 = vmatpush2.msra.mxu0 0.0
    %1357 = vmatprep.subr.mxu0 0.0
    %1358 = vmatpush2.msra.mxu0 0.0
    %1359 = vmatprep.subr.mxu0 0.0
    %1360 = vmatpush2.msra.mxu0 0.0
    %1361 = vmatprep.subr.mxu0 0.0
    %1362 = vmatpush2.msra.mxu0 0.0
    %1363 = vmatprep.subr.mxu0 0.0
    %1364 = vmatpush2.msra.mxu0 0.0
    %1365 = vmatprep.mubr.f32.mxu0 0.0
    %1366 = vmatmul.mubr.f32.gmra.mxu0 %v1299
    %v1367 = vpop.f32.mrf.mxu0
    %v1368 = vadd.f32 0.0, %v1367
    %v1369 = vpop.f32.mrf.mxu0
    %1370 = vdwg.mxu0
    %1371 = vrot.lane.b32.xlu0 %v215, 64
    %v1372 = vpop.permute.xlu0 %1371
    %v1375 = vsel %vm220, %v913, 0
    %1377 = vmatprep.subr.mxu0 0.0
    %1378 = vmatpush1.msra.mxu0 0.0
    %1379 = vmatprep.subr.mxu0 0.0
    %1380 = vmatpush1.msra.mxu0 0.0
    %1381 = vmatprep.subr.mxu0 0.0
    %1382 = vmatpush1.msra.mxu0 0.0
    %1383 = vmatprep.subr.mxu0 0.0
    %1384 = vmatpush1.msra.mxu0 0.0
    %1385 = vmatprep.subr.mxu0 0.0
    %1386 = vmatpush1.msra.mxu0 0.0
    %1387 = vmatprep.subr.mxu0 0.0
    %1388 = vmatpush1.msra.mxu0 0.0
    %1389 = vmatprep.subr.mxu0 0.0
    %1390 = vmatpush1.msra.mxu0 0.0
    %1391 = vmatprep.subr.mxu0 0.0
    %1392 = vmatpush1.msra.mxu0 0.0
    %1393 = vmatprep.subr.mxu0 0.0
    %1394 = vmatpush1.msra.mxu0 0.0
    %1395 = vmatprep.subr.mxu0 0.0
    %1396 = vmatpush1.msra.mxu0 0.0
    %1397 = vmatprep.subr.mxu0 0.0
    %1398 = vmatpush1.msra.mxu0 0.0
    %1399 = vmatprep.subr.mxu0 0.0
    %1400 = vmatpush1.msra.mxu0 0.0
    %1401 = vmatprep.subr.mxu0 0.0
    %1402 = vmatpush1.msra.mxu0 0.0
    %1403 = vmatprep.subr.mxu0 0.0
    %1404 = vmatpush1.msra.mxu0 0.0
    %1405 = vmatprep.subr.mxu0 0.0
    %1406 = vmatpush1.msra.mxu0 0.0
    %1407 = vmatprep.subr.mxu0 0.0
    %1408 = vmatpush1.msra.mxu0 %v1372
    %1409 = vmatprep.subr.mxu0 0.0
    %1410 = vmatpush2.msra.mxu0 0.0
    %1411 = vmatprep.subr.mxu0 0.0
    %1412 = vmatpush2.msra.mxu0 0.0
    %1413 = vmatprep.subr.mxu0 0.0
    %1414 = vmatpush2.msra.mxu0 0.0
    %1415 = vmatprep.subr.mxu0 0.0
    %1416 = vmatpush2.msra.mxu0 0.0
    %1417 = vmatprep.subr.mxu0 0.0
    %1418 = vmatpush2.msra.mxu0 0.0
    %1419 = vmatprep.subr.mxu0 0.0
    %1420 = vmatpush2.msra.mxu0 0.0
    %1421 = vmatprep.subr.mxu0 0.0
    %1422 = vmatpush2.msra.mxu0 0.0
    %1423 = vmatprep.subr.mxu0 0.0
    %1424 = vmatpush2.msra.mxu0 0.0
    %1425 = vmatprep.subr.mxu0 0.0
    %1426 = vmatpush2.msra.mxu0 0.0
    %1427 = vmatprep.subr.mxu0 0.0
    %1428 = vmatpush2.msra.mxu0 0.0
    %1429 = vmatprep.subr.mxu0 0.0
    %1430 = vmatpush2.msra.mxu0 0.0
    %1431 = vmatprep.subr.mxu0 0.0
    %1432 = vmatpush2.msra.mxu0 0.0
    %1433 = vmatprep.subr.mxu0 0.0
    %1434 = vmatpush2.msra.mxu0 0.0
    %1435 = vmatprep.subr.mxu0 0.0
    %1436 = vmatpush2.msra.mxu0 0.0
    %1437 = vmatprep.subr.mxu0 0.0
    %1438 = vmatpush2.msra.mxu0 0.0
    %1439 = vmatprep.subr.mxu0 0.0
    %1440 = vmatpush2.msra.mxu0 0.0
    %1441 = vmatprep.mubr.f32.mxu0 0.0
    %1442 = vmatmul.mubr.f32.gmra.mxu0 %v1375
    %v1443 = vpop.f32.mrf.mxu0
    %v1444 = vadd.f32 0.0, %v1443
    %v1445 = vpop.f32.mrf.mxu0
    %1446 = vdwg.mxu0
    %1447 = vrot.lane.b32.xlu0 %v217, 64
    %v1448 = vpop.permute.xlu0 %1447
    %v1451 = vsel %vm220, %v914, 0
    %1453 = vmatprep.subr.mxu0 0.0
    %1454 = vmatpush1.msra.mxu0 0.0
    %1455 = vmatprep.subr.mxu0 0.0
    %1456 = vmatpush1.msra.mxu0 0.0
    %1457 = vmatprep.subr.mxu0 0.0
    %1458 = vmatpush1.msra.mxu0 0.0
    %1459 = vmatprep.subr.mxu0 0.0
    %1460 = vmatpush1.msra.mxu0 0.0
    %1461 = vmatprep.subr.mxu0 0.0
    %1462 = vmatpush1.msra.mxu0 0.0
    %1463 = vmatprep.subr.mxu0 0.0
    %1464 = vmatpush1.msra.mxu0 0.0
    %1465 = vmatprep.subr.mxu0 0.0
    %1466 = vmatpush1.msra.mxu0 0.0
    %1467 = vmatprep.subr.mxu0 0.0
    %1468 = vmatpush1.msra.mxu0 0.0
    %1469 = vmatprep.subr.mxu0 0.0
    %1470 = vmatpush1.msra.mxu0 0.0
    %1471 = vmatprep.subr.mxu0 0.0
    %1472 = vmatpush1.msra.mxu0 0.0
    %1473 = vmatprep.subr.mxu0 0.0
    %1474 = vmatpush1.msra.mxu0 0.0
    %1475 = vmatprep.subr.mxu0 0.0
    %1476 = vmatpush1.msra.mxu0 0.0
    %1477 = vmatprep.subr.mxu0 0.0
    %1478 = vmatpush1.msra.mxu0 0.0
    %1479 = vmatprep.subr.mxu0 0.0
    %1480 = vmatpush1.msra.mxu0 0.0
    %1481 = vmatprep.subr.mxu0 0.0
    %1482 = vmatpush1.msra.mxu0 0.0
    %1483 = vmatprep.subr.mxu0 0.0
    %1484 = vmatpush1.msra.mxu0 %v1448
    %1485 = vmatprep.subr.mxu0 0.0
    %1486 = vmatpush2.msra.mxu0 0.0
    %1487 = vmatprep.subr.mxu0 0.0
    %1488 = vmatpush2.msra.mxu0 0.0
    %1489 = vmatprep.subr.mxu0 0.0
    %1490 = vmatpush2.msra.mxu0 0.0
    %1491 = vmatprep.subr.mxu0 0.0
    %1492 = vmatpush2.msra.mxu0 0.0
    %1493 = vmatprep.subr.mxu0 0.0
    %1494 = vmatpush2.msra.mxu0 0.0
    %1495 = vmatprep.subr.mxu0 0.0
    %1496 = vmatpush2.msra.mxu0 0.0
    %1497 = vmatprep.subr.mxu0 0.0
    %1498 = vmatpush2.msra.mxu0 0.0
    %1499 = vmatprep.subr.mxu0 0.0
    %1500 = vmatpush2.msra.mxu0 0.0
    %1501 = vmatprep.subr.mxu0 0.0
    %1502 = vmatpush2.msra.mxu0 0.0
    %1503 = vmatprep.subr.mxu0 0.0
    %1504 = vmatpush2.msra.mxu0 0.0
    %1505 = vmatprep.subr.mxu0 0.0
    %1506 = vmatpush2.msra.mxu0 0.0
    %1507 = vmatprep.subr.mxu0 0.0
    %1508 = vmatpush2.msra.mxu0 0.0
    %1509 = vmatprep.subr.mxu0 0.0
    %1510 = vmatpush2.msra.mxu0 0.0
    %1511 = vmatprep.subr.mxu0 0.0
    %1512 = vmatpush2.msra.mxu0 0.0
    %1513 = vmatprep.subr.mxu0 0.0
    %1514 = vmatpush2.msra.mxu0 0.0
    %1515 = vmatprep.subr.mxu0 0.0
    %1516 = vmatpush2.msra.mxu0 0.0
    %1517 = vmatprep.mubr.f32.mxu0 0.0
    %1518 = vmatmul.mubr.f32.gmra.mxu0 %v1451
    %v1519 = vpop.f32.mrf.mxu0
    %v1520 = vadd.f32 0.0, %v1519
    %v1521 = vpop.f32.mrf.mxu0
    %1522 = vdwg.mxu0
    %1523 = vst.msk [vmem:[#allocation2] sm:$0xff] %vm220, %v988
    %1524 = vst.msk [vmem:[#allocation2 + $0x8] sm:$0xff] %vm220, %v1064
    %1527 = vrot.lane.b32.xlu0 %v1140, 8
    %v1528 = vpop.permute.xlu0 %1527
    %1529 = vrot.lane.b32.xlu0 %v1216, 8
    %v1530 = vpop.permute.xlu0 %1529
    %vm1533 = vcmask 130112
    %1534 = vst.msk [vmem:[#allocation2] sm:$0xff] %vm1533, %v1528
    %1535 = vst.msk [vmem:[#allocation2 + $0x8] sm:$0xff] %vm1533, %v1530
    %1538 = vrot.lane.b32.xlu0 %v1292, 16
    %v1539 = vpop.permute.xlu0 %1538
    %1540 = vrot.lane.b32.xlu0 %v1368, 16
    %v1541 = vpop.permute.xlu0 %1540
    %vm1544 = vcmask 195712
    %1545 = vst.msk [vmem:[#allocation2] sm:$0xff] %vm1544, %v1539
    %1546 = vst.msk [vmem:[#allocation2 + $0x8] sm:$0xff] %vm1544, %v1541
    %1549 = vrot.lane.b32.xlu0 %v1444, 24
    %v1550 = vpop.permute.xlu0 %1549
    %1551 = vrot.lane.b32.xlu0 %v1520, 24
    %v1552 = vpop.permute.xlu0 %1551
    %vm1555 = vcmask 261312
    %1556 = vst.msk [vmem:[#allocation2] sm:$0xff] %vm1555, %v1550
    %1557 = vst.msk [vmem:[#allocation2 + $0x8] sm:$0xff] %vm1555, %v1552
    %v1558 = vld [vmem:[#allocation2] sm:$0xff]
    %v1559 = vld [vmem:[#allocation2 + $0x8] sm:$0xff]
    %v1561 = vsel %vm79, %v1558, 0
    %v1564 = vsel %vm79, %v1559, 0
    %1566 = vmatprep.subr.mxu0 0.0
    %1567 = vmatpush1.msra.mxu0 0.0
    %1568 = vmatprep.subr.mxu0 0.0
    %1569 = vmatpush1.msra.mxu0 0.0
    %1570 = vmatprep.subr.mxu0 0.0
    %1571 = vmatpush1.msra.mxu0 0.0
    %1572 = vmatprep.subr.mxu0 0.0
    %1573 = vmatpush1.msra.mxu0 0.0
    %1574 = vmatprep.subr.mxu0 0.0
    %1575 = vmatpush1.msra.mxu0 0.0
    %1576 = vmatprep.subr.mxu0 0.0
    %1577 = vmatpush1.msra.mxu0 0.0
    %1578 = vmatprep.subr.mxu0 0.0
    %1579 = vmatpush1.msra.mxu0 0.0
    %1580 = vmatprep.subr.mxu0 0.0
    %1581 = vmatpush1.msra.mxu0 0.0
    %1582 = vmatprep.subr.mxu0 0.0
    %1583 = vmatpush1.msra.mxu0 0.0
    %1584 = vmatprep.subr.mxu0 0.0
    %1585 = vmatpush1.msra.mxu0 0.0
    %1586 = vmatprep.subr.mxu0 0.0
    %1587 = vmatpush1.msra.mxu0 0.0
    %1588 = vmatprep.subr.mxu0 0.0
    %1589 = vmatpush1.msra.mxu0 0.0
    %1590 = vmatprep.subr.mxu0 0.0
    %1591 = vmatpush1.msra.mxu0 %v51
    %1592 = vmatprep.subr.mxu0 0.0
    %1593 = vmatpush1.msra.mxu0 %v50
    %1594 = vmatprep.subr.mxu0 0.0
    %1595 = vmatpush1.msra.mxu0 %v49
    %1596 = vmatprep.subr.mxu0 0.0
    %1597 = vmatpush1.msra.mxu0 %v48
    %1598 = vmatprep.subr.mxu0 0.0
    %1599 = vmatpush2.msra.mxu0 0.0
    %1600 = vmatprep.subr.mxu0 0.0
    %1601 = vmatpush2.msra.mxu0 0.0
    %1602 = vmatprep.subr.mxu0 0.0
    %1603 = vmatpush2.msra.mxu0 0.0
    %1604 = vmatprep.subr.mxu0 0.0
    %1605 = vmatpush2.msra.mxu0 0.0
    %1606 = vmatprep.subr.mxu0 0.0
    %1607 = vmatpush2.msra.mxu0 0.0
    %1608 = vmatprep.subr.mxu0 0.0
    %1609 = vmatpush2.msra.mxu0 0.0
    %1610 = vmatprep.subr.mxu0 0.0
    %1611 = vmatpush2.msra.mxu0 0.0
    %1612 = vmatprep.subr.mxu0 0.0
    %1613 = vmatpush2.msra.mxu0 0.0
    %1614 = vmatprep.subr.mxu0 0.0
    %1615 = vmatpush2.msra.mxu0 0.0
    %1616 = vmatprep.subr.mxu0 0.0
    %1617 = vmatpush2.msra.mxu0 0.0
    %1618 = vmatprep.subr.mxu0 0.0
    %1619 = vmatpush2.msra.mxu0 0.0
    %1620 = vmatprep.subr.mxu0 0.0
    %1621 = vmatpush2.msra.mxu0 0.0
    %1622 = vmatprep.subr.mxu0 0.0
    %1623 = vmatpush2.msra.mxu0 0.0
    %1624 = vmatprep.subr.mxu0 0.0
    %1625 = vmatpush2.msra.mxu0 0.0
    %1626 = vmatprep.subr.mxu0 0.0
    %1627 = vmatpush2.msra.mxu0 0.0
    %1628 = vmatprep.subr.mxu0 0.0
    %1629 = vmatpush2.msra.mxu0 0.0
    %1630 = vmatprep.mubr.f32.mxu0 0.0
    %1631 = vmatmul.mubr.f32.gmra.mxu0 %v1561
    %v1632 = vpop.f32.mrf.mxu0
    %v1633 = vadd.f32 0.0, %v1632
    %v1634 = vpop.f32.mrf.mxu0
    %1635 = vmatprep.mubr.f32.mxu0 0.0
    %1636 = vmatmul.mubr.f32.gmra.mxu0 %v1564
    %v1637 = vpop.f32.mrf.mxu0
    %v1638 = vadd.f32 0.0, %v1637
    %v1639 = vpop.f32.mrf.mxu0
    %1640 = vdwg.mxu0
    %v1641 = vadd.f32 %v77, %v1633
    %v1642 = vadd.f32 %v78, %v1638
    %v1644 = vlaneseq
    %v1645 = vshrl.u32 %v1644, 7
    %v1646 = vsub.s32 0, %v1645
    %v1647 = vrot.slane %v52, %v1646
    %v1649 = vadd.f32 %v1641, %v1647
    %v1650 = vadd.f32 %v1642, %v1647
    %v1651 = vsel %vm79, %v1649, 0.0
    %1652 = vadd.xlane.f32.xlu0 %v1651
    %v1653 = vpop.xlane.xlu0 %1652
    %v1654 = vsel %vm79, %v1650, 0.0
    %1655 = vadd.xlane.f32.xlu0 %v1654
    %v1656 = vpop.xlane.xlu0 %1655
    %v1657 = vmul.f32 %v1653, %v86
    %v1658 = vmul.f32 %v1656, %v86
    %v1659 = vsub.f32 %v1649, %v1657
    %v1660 = vsub.f32 %v1650, %v1658
    %v1661 = vmul.f32 %v1659, %v1659
    %v1662 = vmul.f32 %v1660, %v1660
    %v1663 = vsel %vm79, %v1661, 0.0
    %1664 = vadd.xlane.f32.xlu0 %v1663
    %v1665 = vpop.xlane.xlu0 %1664
    %v1666 = vsel %vm79, %v1662, 0.0
    %1667 = vadd.xlane.f32.xlu0 %v1666
    %v1668 = vpop.xlane.xlu0 %1667
    %v1669 = vmul.f32 %v1665, %v86
    %v1670 = vmul.f32 %v1668, %v86
    %v1671 = vadd.f32 %v1669, 1e-05
    %v1672 = vadd.f32 %v1670, 1e-05
    %v1673 = vrsqrt.pop %v1671
    %v1674 = vrsqrt.pop %v1672
    %v1675 = vmul.f32 %v1659, %v1673
    %v1676 = vmul.f32 %v1660, %v1674
    %v1678 = vlaneseq
    %v1679 = vshrl.u32 %v1678, 7
    %v1680 = vsub.s32 0, %v1679
    %v1681 = vrot.slane %v53, %v1680
    %v1683 = vmul.f32 %v1675, %v1681
    %v1684 = vmul.f32 %v1676, %v1681
    %v1686 = vlaneseq
    %v1687 = vshrl.u32 %v1686, 7
    %v1688 = vsub.s32 0, %v1687
    %v1689 = vrot.slane %v54, %v1688
    %v1691 = vadd.f32 %v1683, %v1689
    %v1692 = vadd.f32 %v1684, %v1689
    %v1694 = vlaneseq
    %v1695 = vshrl.u32 %v1694, 7
    %v1696 = vsub.s32 0, %v1695
    %v1697 = vrot.slane %v59, %v1696
    %v1700 = vsel %vm79, %v1691, 0
    %v1703 = vsel %vm79, %v1692, 0
    %1705 = vmatprep.subr.mxu0 0.0
    %1706 = vmatpush1.msra.mxu0 0.0
    %1707 = vmatprep.subr.mxu0 0.0
    %1708 = vmatpush1.msra.mxu0 0.0
    %1709 = vmatprep.subr.mxu0 0.0
    %1710 = vmatpush1.msra.mxu0 0.0
    %1711 = vmatprep.subr.mxu0 0.0
    %1712 = vmatpush1.msra.mxu0 0.0
    %1713 = vmatprep.subr.mxu0 0.0
    %1714 = vmatpush1.msra.mxu0 0.0
    %1715 = vmatprep.subr.mxu0 0.0
    %1716 = vmatpush1.msra.mxu0 0.0
    %1717 = vmatprep.subr.mxu0 0.0
    %1718 = vmatpush1.msra.mxu0 0.0
    %1719 = vmatprep.subr.mxu0 0.0
    %1720 = vmatpush1.msra.mxu0 0.0
    %1721 = vmatprep.subr.mxu0 0.0
    %1722 = vmatpush1.msra.mxu0 0.0
    %1723 = vmatprep.subr.mxu0 0.0
    %1724 = vmatpush1.msra.mxu0 0.0
    %1725 = vmatprep.subr.mxu0 0.0
    %1726 = vmatpush1.msra.mxu0 0.0
    %1727 = vmatprep.subr.mxu0 0.0
    %1728 = vmatpush1.msra.mxu0 0.0
    %1729 = vmatprep.subr.mxu0 0.0
    %1730 = vmatpush1.msra.mxu0 %v58
    %1731 = vmatprep.subr.mxu0 0.0
    %1732 = vmatpush1.msra.mxu0 %v57
    %1733 = vmatprep.subr.mxu0 0.0
    %1734 = vmatpush1.msra.mxu0 %v56
    %1735 = vmatprep.subr.mxu0 0.0
    %1736 = vmatpush1.msra.mxu0 %v55
    %1737 = vmatprep.subr.mxu0 0.0
    %1738 = vmatpush2.msra.mxu0 0.0
    %1739 = vmatprep.subr.mxu0 0.0
    %1740 = vmatpush2.msra.mxu0 0.0
    %1741 = vmatprep.subr.mxu0 0.0
    %1742 = vmatpush2.msra.mxu0 0.0
    %1743 = vmatprep.subr.mxu0 0.0
    %1744 = vmatpush2.msra.mxu0 0.0
    %1745 = vmatprep.subr.mxu0 0.0
    %1746 = vmatpush2.msra.mxu0 0.0
    %1747 = vmatprep.subr.mxu0 0.0
    %1748 = vmatpush2.msra.mxu0 0.0
    %1749 = vmatprep.subr.mxu0 0.0
    %1750 = vmatpush2.msra.mxu0 0.0
    %1751 = vmatprep.subr.mxu0 0.0
    %1752 = vmatpush2.msra.mxu0 0.0
    %1753 = vmatprep.subr.mxu0 0.0
    %1754 = vmatpush2.msra.mxu0 0.0
    %1755 = vmatprep.subr.mxu0 0.0
    %1756 = vmatpush2.msra.mxu0 0.0
    %1757 = vmatprep.subr.mxu0 0.0
    %1758 = vmatpush2.msra.mxu0 0.0
    %1759 = vmatprep.subr.mxu0 0.0
    %1760 = vmatpush2.msra.mxu0 0.0
    %1761 = vmatprep.subr.mxu0 0.0
    %1762 = vmatpush2.msra.mxu0 0.0
    %1763 = vmatprep.subr.mxu0 0.0
    %1764 = vmatpush2.msra.mxu0 0.0
    %1765 = vmatprep.subr.mxu0 0.0
    %1766 = vmatpush2.msra.mxu0 0.0
    %1767 = vmatprep.subr.mxu0 0.0
    %1768 = vmatpush2.msra.mxu0 0.0
    %1769 = vmatprep.mubr.f32.mxu0 0.0
    %1770 = vmatmul.mubr.f32.gmra.mxu0 %v1700
    %v1771 = vpop.f32.mrf.mxu0
    %v1772 = vadd.f32 %v1697, %v1771
    %v1773 = vpop.f32.mrf.mxu0
    %1774 = vmatprep.mubr.f32.mxu0 0.0
    %1775 = vmatmul.mubr.f32.gmra.mxu0 %v1703
    %v1776 = vpop.f32.mrf.mxu0
    %v1777 = vadd.f32 %v1697, %v1776
    %v1778 = vpop.f32.mrf.mxu0
    %1779 = vdwg.mxu0
    %v1780 = vmul.f32 %v1772, %v1772
    %v1781 = vmul.f32 %v1777, %v1777
    %v1782 = vmul.f32 %v1772, %v1780
    %v1783 = vmul.f32 %v1777, %v1781
    %v1784 = vmul.f32 %v1782, 0.044715
    %v1785 = vmul.f32 %v1783, 0.044715
    %v1786 = vadd.f32 %v1772, %v1784
    %v1787 = vadd.f32 %v1777, %v1785
    %v1788 = vmul.f32 %v1786, 0.7978846
    %v1789 = vmul.f32 %v1787, 0.7978846
    %v1790 = vtanh.pop %v1788
    %v1791 = vtanh.pop %v1789
    %v1792 = vadd.f32 %v1790, 1.0
    %v1793 = vadd.f32 %v1791, 1.0
    %v1794 = vmul.f32 %v1792, 0.5
    %v1795 = vmul.f32 %v1793, 0.5
    %v1796 = vmul.f32 %v1772, %v1794
    %v1797 = vmul.f32 %v1777, %v1795
    %1798 = vmatprep.subr.mxu0 0.0
    %1799 = vmatpush1.msra.mxu0 %v75
    %1800 = vmatprep.subr.mxu0 0.0
    %1801 = vmatpush1.msra.mxu0 %v74
    %1802 = vmatprep.subr.mxu0 0.0
    %1803 = vmatpush1.msra.mxu0 %v73
    %1804 = vmatprep.subr.mxu0 0.0
    %1805 = vmatpush1.msra.mxu0 %v72
    %1806 = vmatprep.subr.mxu0 0.0
    %1807 = vmatpush1.msra.mxu0 %v71
    %1808 = vmatprep.subr.mxu0 0.0
    %1809 = vmatpush1.msra.mxu0 %v70
    %1810 = vmatprep.subr.mxu0 0.0
    %1811 = vmatpush1.msra.mxu0 %v69
    %1812 = vmatprep.subr.mxu0 0.0
    %1813 = vmatpush1.msra.mxu0 %v68
    %1814 = vmatprep.subr.mxu0 0.0
    %1815 = vmatpush1.msra.mxu0 %v67
    %1816 = vmatprep.subr.mxu0 0.0
    %1817 = vmatpush1.msra.mxu0 %v66
    %1818 = vmatprep.subr.mxu0 0.0
    %1819 = vmatpush1.msra.mxu0 %v65
    %1820 = vmatprep.subr.mxu0 0.0
    %1821 = vmatpush1.msra.mxu0 %v64
    %1822 = vmatprep.subr.mxu0 0.0
    %1823 = vmatpush1.msra.mxu0 %v63
    %1824 = vmatprep.subr.mxu0 0.0
    %1825 = vmatpush1.msra.mxu0 %v62
    %1826 = vmatprep.subr.mxu0 0.0
    %1827 = vmatpush1.msra.mxu0 %v61
    %1828 = vmatprep.subr.mxu0 0.0
    %1829 = vmatpush1.msra.mxu0 %v60
    %1830 = vmatprep.subr.mxu0 0.0
    %1831 = vmatpush2.msra.mxu0 0.0
    %1832 = vmatprep.subr.mxu0 0.0
    %1833 = vmatpush2.msra.mxu0 0.0
    %1834 = vmatprep.subr.mxu0 0.0
    %1835 = vmatpush2.msra.mxu0 0.0
    %1836 = vmatprep.subr.mxu0 0.0
    %1837 = vmatpush2.msra.mxu0 0.0
    %1838 = vmatprep.subr.mxu0 0.0
    %1839 = vmatpush2.msra.mxu0 0.0
    %1840 = vmatprep.subr.mxu0 0.0
    %1841 = vmatpush2.msra.mxu0 0.0
    %1842 = vmatprep.subr.mxu0 0.0
    %1843 = vmatpush2.msra.mxu0 0.0
    %1844 = vmatprep.subr.mxu0 0.0
    %1845 = vmatpush2.msra.mxu0 0.0
    %1846 = vmatprep.subr.mxu0 0.0
    %1847 = vmatpush2.msra.mxu0 0.0
    %1848 = vmatprep.subr.mxu0 0.0
    %1849 = vmatpush2.msra.mxu0 0.0
    %1850 = vmatprep.subr.mxu0 0.0
    %1851 = vmatpush2.msra.mxu0 0.0
    %1852 = vmatprep.subr.mxu0 0.0
    %1853 = vmatpush2.msra.mxu0 0.0
    %1854 = vmatprep.subr.mxu0 0.0
    %1855 = vmatpush2.msra.mxu0 0.0
    %1856 = vmatprep.subr.mxu0 0.0
    %1857 = vmatpush2.msra.mxu0 0.0
    %1858 = vmatprep.subr.mxu0 0.0
    %1859 = vmatpush2.msra.mxu0 0.0
    %1860 = vmatprep.subr.mxu0 0.0
    %1861 = vmatpush2.msra.mxu0 0.0
    %1862 = vmatprep.mubr.f32.mxu0 0.0
    %1863 = vmatmul.mubr.f32.gmra.mxu0 %v1796
    %v1864 = vpop.f32.mrf.mxu0
    %v1865 = vadd.f32 0.0, %v1864
    %v1866 = vpop.f32.mrf.mxu0
    %1867 = vmatprep.mubr.f32.mxu0 0.0
    %1868 = vmatmul.mubr.f32.gmra.mxu0 %v1797
    %v1869 = vpop.f32.mrf.mxu0
    %v1870 = vadd.f32 0.0, %v1869
    %v1871 = vpop.f32.mrf.mxu0
    %1872 = vdwg.mxu0
    %v1873 = vadd.f32 %v1649, %v1865
    %v1874 = vadd.f32 %v1650, %v1870
    %v1876 = vlaneseq
    %v1877 = vshrl.u32 %v1876, 7
    %v1878 = vsub.s32 0, %v1877
    %v1879 = vrot.slane %v76, %v1878
    %v1881 = vadd.f32 %v1873, %v1879
    %v1882 = vadd.f32 %v1874, %v1879
    %1883 = vst.msk [vmem:[#allocation3] sm:$0xff] %vm79, %v1881
    %1884 = vst.msk [vmem:[#allocation3 + $0x8] sm:$0xff] %vm79, %v1882
    // Predicated region
    $region50: #{tpu_custom_call.1} parent=1 // pred_check
      _
    $region51: #{tpu_custom_call.1} parent=1 // pred_check_branch
      %1886 = sbr.rel (0) target = $region53
    $region52: #{tpu_custom_call.1} parent=1 // pred_region
      %s1888 = ssub.s32 256, 256
      %1889 = vsyncadd [#allocation4], %s1888
      %s1890 = sshll.u32 [#allocation3], 4
      %s1891 = int_to_ptr.vmem [resolvable:$true] %s1890
      %1896 = dma.vmem_to_hbm [thread:$0]  %s1891, 256, %s12, [#allocation4], 128, 128, 8
    $region53: #{tpu_custom_call.1} parent=1 // pred_fallthru
      _
    // Predicated region
    $region54: #{tpu_custom_call.1} parent=1 // pred_check
      _
    $region55: #{tpu_custom_call.1} parent=1 // pred_check_branch
      %1898 = sbr.rel (0) target = $region57
    $region56: #{tpu_custom_call.1} parent=1 // pred_region
      %1899 = dma.done [#allocation4], 256
    $region57: #{tpu_custom_call.1} parent=1 // pred_fallthru
      _
    %1900 = vsyncpa [#allocation4], 1

</llo_original>
